<compile_context>
chip_gen: v5e
topology: v5e:2x2
jax: 0.10.0
libtpu: 0.0.40
codegen_flags: <defaults>
</compile_context>

<pallas_src>
import jax
import jax.numpy as jnp
import numpy as np
from jax.experimental import pallas as pl
from jax.experimental.pallas import tpu as pltpu


def conv_block_forward(x_nchw, params):
    """Fused Pallas implementation of ConvBlock.forward -> (log_s, t)."""
    B, Cin, H, W = x_nchw.shape
    Hc = params["w1"].shape[0]
    Co = 2 * Cin

    # Flattened padded-row geometry (position index = i * P + j of the padded image).
    P = W + 2                     # padded image row length
    Npad = (H + 2) * P            # positions of one zero-padded image
    G = P + 1                     # max |tap shift| in flattened positions (halo)
    Nh = Npad + 2 * G             # hidden positions (conv3 needs a halo of G)
    Nx = Npad + 4 * G             # input positions (conv1 needs another halo of G)
    K3 = 9 * Hc                   # packed contraction depth of conv3

    f32, bf16 = jnp.float32, jnp.bfloat16

    # ---- XLA-side prep (cheap: no transposes, activations go bf16) ---------
    x = x_nchw.astype(bf16)
    xsp = jnp.pad(x, ((0, 0), (0, 0), (1, 1), (1, 1)))               # zero ring
    xsp = xsp.reshape(B, Cin, Npad)
    x_buf = jnp.pad(xsp, ((0, 0), (0, 0), (2 * G, 2 * G)))           # (B, Cin, Nx) bf16

    # Valid-position mask in the hidden space: 1 on interior image pixels,
    # 0 on the zero-padding ring and halo guard positions.  Lane-dense (1, Nh).
    a = jnp.arange(Nh)
    q = a - G
    i_row, j_col = q // P, q % P
    mask = ((q >= 0) & (q < Npad)
            & (i_row >= 1) & (i_row <= H)
            & (j_col >= 1) & (j_col <= W)).astype(f32)[None, :]      # (1, Nh)

    # Weights (bf16 MXU operands), channel-major: out = W @ x.
    w1 = jnp.transpose(params["w1"], (2, 3, 0, 1)).reshape(9, Hc, Cin).astype(bf16)
    w2 = params["w2"][:, :, 0, 0].astype(bf16)                       # (Hc_out, Hc_in)
    perm = jnp.concatenate([jnp.arange(0, Co, 2), jnp.arange(1, Co, 2)])
    w3p = jnp.transpose(params["w3"], (0, 2, 3, 1)).reshape(Co, K3)  # [o, t*Hc + i]
    w3p = w3p[perm].astype(bf16)                                     # evens | odds

    # Pre-folded actnorm / Conv2dZeros affine params (f32 columns).
    s1 = jnp.exp(params["an1_logs"]).reshape(Hc, 1)
    b1 = params["an1_bias"].reshape(Hc, 1) * s1
    s2 = jnp.exp(params["an2_logs"]).reshape(Hc, 1)
    b2 = params["an2_bias"].reshape(Hc, 1) * s2
    s3_full = jnp.exp(params["logs3"].reshape(-1) * 3.0)
    s3 = s3_full[perm].reshape(Co, 1)
    b3 = (params["b3"] * s3_full)[perm].reshape(Co, 1)

    # Flattened offsets of the 9 taps of a 3x3 / padding=1 convolution.
    taps = [(dy - 1) * P + (dx - 1) for dy in range(3) for dx in range(3)]

    # ---- fused kernel (one image per grid step) ----------------------------
    def kernel(x_ref, m_ref, w1_ref, s1_ref, b1_ref, w2_ref, s2_ref, b2_ref,
               w3_ref, s3_ref, b3_ref, o_ref, h_ref, p3_ref):
        # conv1 (3x3): 9 accumulating (Hc, Cin) @ (Cin, Nh) dots.  K is tiny
        # (Cin), so tap-packing buys nothing; the f32 accumulator is lane-dense.
        acc1 = jnp.dot(w1_ref[0], x_ref[:, pl.ds(G + taps[0], Nh)],
                       preferred_element_type=jnp.float32)
        for t in range(1, 9):
            acc1 += jnp.dot(w1_ref[t], x_ref[:, pl.ds(G + taps[t], Nh)],
                            preferred_element_type=jnp.float32)
        # actnorm1 (pre-folded) + relu; zero ring/halo rows before conv2.
        h_ref[...] = (jnp.maximum(acc1 * s1_ref[...] + b1_ref[...], 0.0)
                      * m_ref[...]).astype(jnp.bfloat16)
        # conv2 (1x1) + actnorm2 + relu; mask again = conv3's zero padding.
        acc2 = jnp.dot(w2_ref[...], h_ref[...],
                       preferred_element_type=jnp.float32)
        h_ref[...] = (jnp.maximum(acc2 * s2_ref[...] + b2_ref[...], 0.0)
                      * m_ref[...]).astype(jnp.bfloat16)
        # conv3 (3x3, Conv2dZeros): pack the 9 taps into a single K = 9*Hc
        # contraction (tile-aligned 32-row sublane stores into bf16 scratch).
        for t in range(9):
            p3_ref[pl.ds(t * Hc, Hc), :] = h_ref[:, pl.ds(G + taps[t], Npad)]
        acc3 = jnp.dot(w3_ref[...], p3_ref[...],
                       preferred_element_type=jnp.float32)
        o_ref[...] = acc3 * s3_ref[...] + b3_ref[...]

    flops = B * (2 * Nh * 9 * Cin * Hc + 2 * Nh * Hc * Hc + 2 * Npad * K3 * Co)
    bytes_accessed = (B * Cin * Nx * 2 + Nh * 4
                      + (9 * Cin * Hc + Hc * Hc + K3 * Co) * 2
                      + (4 * Hc + 2 * Co) * 4 + B * Co * Npad * 4)

    const2 = lambda b: (0, 0)
    const3 = lambda b: (0, 0, 0)
    y = pl.pallas_call(
        kernel,
        out_shape=jax.ShapeDtypeStruct((B, Co, Npad), f32),
        grid=(B,),
        in_specs=[
            pl.BlockSpec((None, Cin, Nx), lambda b: (b, 0, 0)),   # x (per image, bf16)
            pl.BlockSpec((1, Nh), const2),                        # valid-position mask
            pl.BlockSpec((9, Hc, Cin), const3),                   # conv1 taps
            pl.BlockSpec((Hc, 1), const2),                        # scale1
            pl.BlockSpec((Hc, 1), const2),                        # bias1'
            pl.BlockSpec((Hc, Hc), const2),                       # conv2
            pl.BlockSpec((Hc, 1), const2),                        # scale2
            pl.BlockSpec((Hc, 1), const2),                        # bias2'
            pl.BlockSpec((Co, K3), const2),                       # conv3 (tap-packed)
            pl.BlockSpec((Co, 1), const2),                        # scale3
            pl.BlockSpec((Co, 1), const2),                        # bias3'
        ],
        out_specs=pl.BlockSpec((None, Co, Npad), lambda b: (b, 0, 0)),
        scratch_shapes=[pltpu.VMEM((Hc, Nh), jnp.bfloat16),       # hidden (bf16)
                        pltpu.VMEM((K3, Npad), jnp.bfloat16)],    # conv3 packed K
        compiler_params=pltpu.CompilerParams(
            dimension_semantics=("parallel",),
            vmem_limit_bytes=32 * 1024 * 1024,
        ),
        cost_estimate=pl.CostEstimate(flops=flops, transcendentals=0,
                                      bytes_accessed=bytes_accessed),
    )(x_buf, mask, w1, s1, b1, w2, s2, b2, w3p, s3, b3)

    # Epilogue: already channel-major (NCHW) -- just drop the padding ring.
    # TODO(synk): if log_s precision ever matters downstream (it feeds exp()),
    # keep conv3's input in f32 on v6e/v7x; bf16 is used here per the perf plan.
    y = y.reshape(B, Co, H + 2, P)[:, :, 1:H + 1, 1:W + 1]          # (B, Co, H, W)
    return y[:, :Cin], y[:, Cin:]


# ----------------------------------------------------------------------------
# Pure-JAX f32 reference (for the correctness check)
# ----------------------------------------------------------------------------
def _ref_forward(x, p):
    dn = ("NCHW", "OIHW", "NCHW")
    conv = lambda a, w: jax.lax.conv_general_dilated(a, w, (1, 1), "SAME",
                                                     dimension_numbers=dn)
    an = lambda a, bias, logs: (a + bias[None, :, None, None]) * jnp.exp(
        logs[None, :, None, None])
    h = jnp.maximum(an(conv(x, p["w1"]), p["an1_bias"], p["an1_logs"]), 0.0)
    h = jnp.maximum(an(conv(h, p["w2"]), p["an2_bias"], p["an2_logs"]), 0.0)
    y = conv(h, p["w3"]) + p["b3"][None, :, None, None]
    y = y * jnp.exp(p["logs3"].reshape(1, -1, 1, 1) * 3.0)
    return y[:, 0::2], y[:, 1::2]


if __name__ == "__main__":
    key = jax.random.PRNGKey(0)
    ks = jax.random.split(key, 10)

    B, C_IN, HID, H, W = 2, 4, 32, 16, 16
    x = jax.random.normal(ks[0], (B, C_IN, H, W), jnp.float32)

    # NOTE: the PyTorch module zero-inits conv3/b3/logs3 and the actnorm
    # params (pre data-dependent init), which would make the outputs trivially
    # zero.  Random values are used so the numerical check is meaningful.
    params = {
        "w1": 0.05 * jax.random.normal(ks[1], (HID, C_IN, 3, 3), jnp.float32),
        "w2": 0.05 * jax.random.normal(ks[2], (HID, HID, 1, 1), jnp.float32),
        "an1_bias": 0.5 * jax.random.normal(ks[3], (HID,), jnp.float32),
        "an1_logs": 0.5 * jax.random.normal(ks[4], (HID,), jnp.float32),
        "an2_bias": 0.5 * jax.random.normal(ks[5], (HID,), jnp.float32),
        "an2_logs": 0.5 * jax.random.normal(ks[6], (HID,), jnp.float32),
        "w3": 0.05 * jax.random.normal(ks[7], (2 * C_IN, HID, 3, 3), jnp.float32),
        "b3": 0.1 * jax.random.normal(ks[8], (2 * C_IN,), jnp.float32),
        "logs3": 0.1 * jax.random.normal(ks[9], (2 * C_IN, 1, 1), jnp.float32),
    }

    fwd = jax.jit(conv_block_forward)
    log_s, t = jax.block_until_ready(fwd(x, params))
    log_s_r, t_r = _ref_forward(x, params)

    assert log_s.shape == (B, C_IN, H, W) and t.shape == (B, C_IN, H, W)
    # bf16 MXU operands (f32 accumulation) -> compare against the f32
    # reference with relaxed tolerances.
    np.testing.assert_allclose(np.asarray(log_s), np.asarray(log_s_r),
                               rtol=5e-2, atol=2e-2)
    np.testing.assert_allclose(np.asarray(t), np.asarray(t_r),
                               rtol=5e-2, atol=2e-2)
    print("KERNEL_OK")
</pallas_src>

<mosaic_0001>
module attributes {stable_mosaic.version = 11 : i64} {
  func.func @kernel(%arg0: i32, %arg1: memref<1x4x400xbf16, #tpu.memory_space<vmem>>, %arg2: memref<1x362xf32, #tpu.memory_space<vmem>>, %arg3: memref<9x32x4xbf16, #tpu.memory_space<vmem>>, %arg4: memref<32x1xf32, #tpu.memory_space<vmem>>, %arg5: memref<32x1xf32, #tpu.memory_space<vmem>>, %arg6: memref<32x32xbf16, #tpu.memory_space<vmem>>, %arg7: memref<32x1xf32, #tpu.memory_space<vmem>>, %arg8: memref<32x1xf32, #tpu.memory_space<vmem>>, %arg9: memref<8x288xbf16, #tpu.memory_space<vmem>>, %arg10: memref<8x1xf32, #tpu.memory_space<vmem>>, %arg11: memref<8x1xf32, #tpu.memory_space<vmem>>, %arg12: memref<1x8x324xf32, #tpu.memory_space<vmem>>, %arg13: memref<32x362xbf16, #tpu.memory_space<vmem>>, %arg14: memref<288x324xbf16, #tpu.memory_space<vmem>>) attributes {dimension_semantics = [#tpu.dimension_semantics<parallel>], iteration_bounds = array<i64: 2>, scalar_prefetch = 0 : i64, scratch_operands = 2 : i64, tpu.core_type = #tpu.core_type<tc>, window_params = [{transform_indices = @transform_0, window_bounds = array<i64: 1, 4, 400>}, {pipeline_mode = #tpu.pipeline_mode<synchronous>, transform_indices = @transform_1, window_bounds = array<i64: 1, 362>}, {pipeline_mode = #tpu.pipeline_mode<synchronous>, transform_indices = @transform_2, window_bounds = array<i64: 9, 32, 4>}, {pipeline_mode = #tpu.pipeline_mode<synchronous>, transform_indices = @transform_3, window_bounds = array<i64: 32, 1>}, {pipeline_mode = #tpu.pipeline_mode<synchronous>, transform_indices = @transform_4, window_bounds = array<i64: 32, 1>}, {pipeline_mode = #tpu.pipeline_mode<synchronous>, transform_indices = @transform_5, window_bounds = array<i64: 32, 32>}, {pipeline_mode = #tpu.pipeline_mode<synchronous>, transform_indices = @transform_6, window_bounds = array<i64: 32, 1>}, {pipeline_mode = #tpu.pipeline_mode<synchronous>, transform_indices = @transform_7, window_bounds = array<i64: 32, 1>}, {pipeline_mode = #tpu.pipeline_mode<synchronous>, transform_indices = @transform_8, window_bounds = array<i64: 8, 288>}, {pipeline_mode = #tpu.pipeline_mode<synchronous>, transform_indices = @transform_9, window_bounds = array<i64: 8, 1>}, {pipeline_mode = #tpu.pipeline_mode<synchronous>, transform_indices = @transform_10, window_bounds = array<i64: 8, 1>}, {transform_indices = @transform_11, window_bounds = array<i64: 1, 8, 324>}]} {
    %c0 = arith.constant 0 : index
    %c0_0 = arith.constant 0 : index
    %c0_1 = arith.constant 0 : index
    %0 = vector.load %arg3[%c0, %c0_0, %c0_1] : memref<9x32x4xbf16, #tpu.memory_space<vmem>>, vector<1x32x4xbf16>
    %1 = vector.shape_cast %0 : vector<1x32x4xbf16> to vector<32x4xbf16>
    %c0_2 = arith.constant 0 : index
    %c0_3 = arith.constant 0 : index
    %c0_4 = arith.constant 0 : index
    %2 = vector.load %arg1[%c0_2, %c0_3, %c0_4] : memref<1x4x400xbf16, #tpu.memory_space<vmem>>, vector<1x4x362xbf16>
    %3 = vector.shape_cast %2 : vector<1x4x362xbf16> to vector<4x362xbf16>
    %cst = arith.constant dense<0.000000e+00> : vector<32x362xf32>
    %4 = tpu.matmul %1, %3, %cst {dimension_numbers = #tpu.dot_dimension_numbers<[1], [0], [0], [1], [0, 0, 1, 1], [], []>} : vector<32x4xbf16>, vector<4x362xbf16>, vector<32x362xf32> -> vector<32x362xf32>
    %c1 = arith.constant 1 : index
    %c0_5 = arith.constant 0 : index
    %c0_6 = arith.constant 0 : index
    %5 = vector.load %arg3[%c1, %c0_5, %c0_6] : memref<9x32x4xbf16, #tpu.memory_space<vmem>>, vector<1x32x4xbf16>
    %6 = vector.shape_cast %5 : vector<1x32x4xbf16> to vector<32x4xbf16>
    %c0_7 = arith.constant 0 : index
    %c0_8 = arith.constant 0 : index
    %c1_9 = arith.constant 1 : index
    %7 = vector.load %arg1[%c0_7, %c0_8, %c1_9] : memref<1x4x400xbf16, #tpu.memory_space<vmem>>, vector<1x4x362xbf16>
    %8 = vector.shape_cast %7 : vector<1x4x362xbf16> to vector<4x362xbf16>
    %cst_10 = arith.constant dense<0.000000e+00> : vector<32x362xf32>
    %9 = tpu.matmul %6, %8, %cst_10 {dimension_numbers = #tpu.dot_dimension_numbers<[1], [0], [0], [1], [0, 0, 1, 1], [], []>} : vector<32x4xbf16>, vector<4x362xbf16>, vector<32x362xf32> -> vector<32x362xf32>
    %10 = arith.addf %4, %9 : vector<32x362xf32>
    %c2 = arith.constant 2 : index
    %c0_11 = arith.constant 0 : index
    %c0_12 = arith.constant 0 : index
    %11 = vector.load %arg3[%c2, %c0_11, %c0_12] : memref<9x32x4xbf16, #tpu.memory_space<vmem>>, vector<1x32x4xbf16>
    %12 = vector.shape_cast %11 : vector<1x32x4xbf16> to vector<32x4xbf16>
    %c0_13 = arith.constant 0 : index
    %c0_14 = arith.constant 0 : index
    %c2_15 = arith.constant 2 : index
    %13 = vector.load %arg1[%c0_13, %c0_14, %c2_15] : memref<1x4x400xbf16, #tpu.memory_space<vmem>>, vector<1x4x362xbf16>
    %14 = vector.shape_cast %13 : vector<1x4x362xbf16> to vector<4x362xbf16>
    %cst_16 = arith.constant dense<0.000000e+00> : vector<32x362xf32>
    %15 = tpu.matmul %12, %14, %cst_16 {dimension_numbers = #tpu.dot_dimension_numbers<[1], [0], [0], [1], [0, 0, 1, 1], [], []>} : vector<32x4xbf16>, vector<4x362xbf16>, vector<32x362xf32> -> vector<32x362xf32>
    %16 = arith.addf %10, %15 : vector<32x362xf32>
    %c3 = arith.constant 3 : index
    %c0_17 = arith.constant 0 : index
    %c0_18 = arith.constant 0 : index
    %17 = vector.load %arg3[%c3, %c0_17, %c0_18] : memref<9x32x4xbf16, #tpu.memory_space<vmem>>, vector<1x32x4xbf16>
    %18 = vector.shape_cast %17 : vector<1x32x4xbf16> to vector<32x4xbf16>
    %c0_19 = arith.constant 0 : index
    %c0_20 = arith.constant 0 : index
    %c18 = arith.constant 18 : index
    %19 = vector.load %arg1[%c0_19, %c0_20, %c18] : memref<1x4x400xbf16, #tpu.memory_space<vmem>>, vector<1x4x362xbf16>
    %20 = vector.shape_cast %19 : vector<1x4x362xbf16> to vector<4x362xbf16>
    %cst_21 = arith.constant dense<0.000000e+00> : vector<32x362xf32>
    %21 = tpu.matmul %18, %20, %cst_21 {dimension_numbers = #tpu.dot_dimension_numbers<[1], [0], [0], [1], [0, 0, 1, 1], [], []>} : vector<32x4xbf16>, vector<4x362xbf16>, vector<32x362xf32> -> vector<32x362xf32>
    %22 = arith.addf %16, %21 : vector<32x362xf32>
    %c4 = arith.constant 4 : index
    %c0_22 = arith.constant 0 : index
    %c0_23 = arith.constant 0 : index
    %23 = vector.load %arg3[%c4, %c0_22, %c0_23] : memref<9x32x4xbf16, #tpu.memory_space<vmem>>, vector<1x32x4xbf16>
    %24 = vector.shape_cast %23 : vector<1x32x4xbf16> to vector<32x4xbf16>
    %c0_24 = arith.constant 0 : index
    %c0_25 = arith.constant 0 : index
    %c19 = arith.constant 19 : index
    %25 = vector.load %arg1[%c0_24, %c0_25, %c19] : memref<1x4x400xbf16, #tpu.memory_space<vmem>>, vector<1x4x362xbf16>
    %26 = vector.shape_cast %25 : vector<1x4x362xbf16> to vector<4x362xbf16>
    %cst_26 = arith.constant dense<0.000000e+00> : vector<32x362xf32>
    %27 = tpu.matmul %24, %26, %cst_26 {dimension_numbers = #tpu.dot_dimension_numbers<[1], [0], [0], [1], [0, 0, 1, 1], [], []>} : vector<32x4xbf16>, vector<4x362xbf16>, vector<32x362xf32> -> vector<32x362xf32>
    %28 = arith.addf %22, %27 : vector<32x362xf32>
    %c5 = arith.constant 5 : index
    %c0_27 = arith.constant 0 : index
    %c0_28 = arith.constant 0 : index
    %29 = vector.load %arg3[%c5, %c0_27, %c0_28] : memref<9x32x4xbf16, #tpu.memory_space<vmem>>, vector<1x32x4xbf16>
    %30 = vector.shape_cast %29 : vector<1x32x4xbf16> to vector<32x4xbf16>
    %c0_29 = arith.constant 0 : index
    %c0_30 = arith.constant 0 : index
    %c20 = arith.constant 20 : index
    %31 = vector.load %arg1[%c0_29, %c0_30, %c20] : memref<1x4x400xbf16, #tpu.memory_space<vmem>>, vector<1x4x362xbf16>
    %32 = vector.shape_cast %31 : vector<1x4x362xbf16> to vector<4x362xbf16>
    %cst_31 = arith.constant dense<0.000000e+00> : vector<32x362xf32>
    %33 = tpu.matmul %30, %32, %cst_31 {dimension_numbers = #tpu.dot_dimension_numbers<[1], [0], [0], [1], [0, 0, 1, 1], [], []>} : vector<32x4xbf16>, vector<4x362xbf16>, vector<32x362xf32> -> vector<32x362xf32>
    %34 = arith.addf %28, %33 : vector<32x362xf32>
    %c6 = arith.constant 6 : index
    %c0_32 = arith.constant 0 : index
    %c0_33 = arith.constant 0 : index
    %35 = vector.load %arg3[%c6, %c0_32, %c0_33] : memref<9x32x4xbf16, #tpu.memory_space<vmem>>, vector<1x32x4xbf16>
    %36 = vector.shape_cast %35 : vector<1x32x4xbf16> to vector<32x4xbf16>
    %c0_34 = arith.constant 0 : index
    %c0_35 = arith.constant 0 : index
    %c36 = arith.constant 36 : index
    %37 = vector.load %arg1[%c0_34, %c0_35, %c36] : memref<1x4x400xbf16, #tpu.memory_space<vmem>>, vector<1x4x362xbf16>
    %38 = vector.shape_cast %37 : vector<1x4x362xbf16> to vector<4x362xbf16>
    %cst_36 = arith.constant dense<0.000000e+00> : vector<32x362xf32>
    %39 = tpu.matmul %36, %38, %cst_36 {dimension_numbers = #tpu.dot_dimension_numbers<[1], [0], [0], [1], [0, 0, 1, 1], [], []>} : vector<32x4xbf16>, vector<4x362xbf16>, vector<32x362xf32> -> vector<32x362xf32>
    %40 = arith.addf %34, %39 : vector<32x362xf32>
    %c7 = arith.constant 7 : index
    %c0_37 = arith.constant 0 : index
    %c0_38 = arith.constant 0 : index
    %41 = vector.load %arg3[%c7, %c0_37, %c0_38] : memref<9x32x4xbf16, #tpu.memory_space<vmem>>, vector<1x32x4xbf16>
    %42 = vector.shape_cast %41 : vector<1x32x4xbf16> to vector<32x4xbf16>
    %c0_39 = arith.constant 0 : index
    %c0_40 = arith.constant 0 : index
    %c37 = arith.constant 37 : index
    %43 = vector.load %arg1[%c0_39, %c0_40, %c37] : memref<1x4x400xbf16, #tpu.memory_space<vmem>>, vector<1x4x362xbf16>
    %44 = vector.shape_cast %43 : vector<1x4x362xbf16> to vector<4x362xbf16>
    %cst_41 = arith.constant dense<0.000000e+00> : vector<32x362xf32>
    %45 = tpu.matmul %42, %44, %cst_41 {dimension_numbers = #tpu.dot_dimension_numbers<[1], [0], [0], [1], [0, 0, 1, 1], [], []>} : vector<32x4xbf16>, vector<4x362xbf16>, vector<32x362xf32> -> vector<32x362xf32>
    %46 = arith.addf %40, %45 : vector<32x362xf32>
    %c8 = arith.constant 8 : index
    %c0_42 = arith.constant 0 : index
    %c0_43 = arith.constant 0 : index
    %47 = vector.load %arg3[%c8, %c0_42, %c0_43] : memref<9x32x4xbf16, #tpu.memory_space<vmem>>, vector<1x32x4xbf16>
    %48 = vector.shape_cast %47 : vector<1x32x4xbf16> to vector<32x4xbf16>
    %c0_44 = arith.constant 0 : index
    %c0_45 = arith.constant 0 : index
    %c38 = arith.constant 38 : index
    %49 = vector.load %arg1[%c0_44, %c0_45, %c38] : memref<1x4x400xbf16, #tpu.memory_space<vmem>>, vector<1x4x362xbf16>
    %50 = vector.shape_cast %49 : vector<1x4x362xbf16> to vector<4x362xbf16>
    %cst_46 = arith.constant dense<0.000000e+00> : vector<32x362xf32>
    %51 = tpu.matmul %48, %50, %cst_46 {dimension_numbers = #tpu.dot_dimension_numbers<[1], [0], [0], [1], [0, 0, 1, 1], [], []>} : vector<32x4xbf16>, vector<4x362xbf16>, vector<32x362xf32> -> vector<32x362xf32>
    %52 = arith.addf %46, %51 : vector<32x362xf32>
    %c0_47 = arith.constant 0 : index
    %c0_48 = arith.constant 0 : index
    %53 = vector.load %arg4[%c0_47, %c0_48] : memref<32x1xf32, #tpu.memory_space<vmem>>, vector<32x1xf32>
    %54 = vector.broadcast %53 : vector<32x1xf32> to vector<32x362xf32>
    %55 = arith.mulf %52, %54 : vector<32x362xf32>
    %c0_49 = arith.constant 0 : index
    %c0_50 = arith.constant 0 : index
    %56 = vector.load %arg5[%c0_49, %c0_50] : memref<32x1xf32, #tpu.memory_space<vmem>>, vector<32x1xf32>
    %57 = vector.broadcast %56 : vector<32x1xf32> to vector<32x362xf32>
    %58 = arith.addf %55, %57 : vector<32x362xf32>
    %cst_51 = arith.constant 0.000000e+00 : f32
    %59 = vector.broadcast %cst_51 : f32 to vector<32x362xf32>
    %60 = arith.maximumf %58, %59 : vector<32x362xf32>
    %c0_52 = arith.constant 0 : index
    %c0_53 = arith.constant 0 : index
    %61 = vector.load %arg2[%c0_52, %c0_53] : memref<1x362xf32, #tpu.memory_space<vmem>>, vector<1x362xf32>
    %62 = vector.broadcast %61 : vector<1x362xf32> to vector<32x362xf32>
    %63 = arith.mulf %60, %62 : vector<32x362xf32>
    %64 = arith.truncf %63 : vector<32x362xf32> to vector<32x362xbf16>
    %c0_54 = arith.constant 0 : index
    %c0_55 = arith.constant 0 : index
    %65 = vector.load %arg13[%c0_54, %c0_55] : memref<32x362xbf16, #tpu.memory_space<vmem>>, vector<32x362xbf16>
    tpu.vector_store %arg13[%c0_54, %c0_55], %64 {strides = array<i32>} : memref<32x362xbf16, #tpu.memory_space<vmem>>, vector<32x362xbf16>,
    %c0_56 = arith.constant 0 : index
    %c0_57 = arith.constant 0 : index
    %66 = vector.load %arg6[%c0_56, %c0_57] : memref<32x32xbf16, #tpu.memory_space<vmem>>, vector<32x32xbf16>
    %c0_58 = arith.constant 0 : index
    %c0_59 = arith.constant 0 : index
    %67 = vector.load %arg13[%c0_58, %c0_59] : memref<32x362xbf16, #tpu.memory_space<vmem>>, vector<32x362xbf16>
    %cst_60 = arith.constant dense<0.000000e+00> : vector<32x362xf32>
    %68 = tpu.matmul %66, %67, %cst_60 {dimension_numbers = #tpu.dot_dimension_numbers<[1], [0], [0], [1], [0, 0, 1, 1], [], []>} : vector<32x32xbf16>, vector<32x362xbf16>, vector<32x362xf32> -> vector<32x362xf32>
    %c0_61 = arith.constant 0 : index
    %c0_62 = arith.constant 0 : index
    %69 = vector.load %arg7[%c0_61, %c0_62] : memref<32x1xf32, #tpu.memory_space<vmem>>, vector<32x1xf32>
    %70 = vector.broadcast %69 : vector<32x1xf32> to vector<32x362xf32>
    %71 = arith.mulf %68, %70 : vector<32x362xf32>
    %c0_63 = arith.constant 0 : index
    %c0_64 = arith.constant 0 : index
    %72 = vector.load %arg8[%c0_63, %c0_64] : memref<32x1xf32, #tpu.memory_space<vmem>>, vector<32x1xf32>
    %73 = vector.broadcast %72 : vector<32x1xf32> to vector<32x362xf32>
    %74 = arith.addf %71, %73 : vector<32x362xf32>
    %cst_65 = arith.constant 0.000000e+00 : f32
    %75 = vector.broadcast %cst_65 : f32 to vector<32x362xf32>
    %76 = arith.maximumf %74, %75 : vector<32x362xf32>
    %c0_66 = arith.constant 0 : index
    %c0_67 = arith.constant 0 : index
    %77 = vector.load %arg2[%c0_66, %c0_67] : memref<1x362xf32, #tpu.memory_space<vmem>>, vector<1x362xf32>
    %78 = vector.broadcast %77 : vector<1x362xf32> to vector<32x362xf32>
    %79 = arith.mulf %76, %78 : vector<32x362xf32>
    %80 = arith.truncf %79 : vector<32x362xf32> to vector<32x362xbf16>
    %c0_68 = arith.constant 0 : index
    %c0_69 = arith.constant 0 : index
    %81 = vector.load %arg13[%c0_68, %c0_69] : memref<32x362xbf16, #tpu.memory_space<vmem>>, vector<32x362xbf16>
    tpu.vector_store %arg13[%c0_68, %c0_69], %80 {strides = array<i32>} : memref<32x362xbf16, #tpu.memory_space<vmem>>, vector<32x362xbf16>,
    %c0_70 = arith.constant 0 : index
    %c0_71 = arith.constant 0 : index
    %82 = vector.load %arg13[%c0_70, %c0_71] : memref<32x362xbf16, #tpu.memory_space<vmem>>, vector<32x324xbf16>
    %c0_72 = arith.constant 0 : index
    %c0_73 = arith.constant 0 : index
    %83 = vector.load %arg14[%c0_72, %c0_73] : memref<288x324xbf16, #tpu.memory_space<vmem>>, vector<32x324xbf16>
    tpu.vector_store %arg14[%c0_72, %c0_73], %82 {strides = array<i32>} : memref<288x324xbf16, #tpu.memory_space<vmem>>, vector<32x324xbf16>,
    %c0_74 = arith.constant 0 : index
    %c1_75 = arith.constant 1 : index
    %84 = vector.load %arg13[%c0_74, %c1_75] : memref<32x362xbf16, #tpu.memory_space<vmem>>, vector<32x324xbf16>
    %c32 = arith.constant 32 : index
    %c0_76 = arith.constant 0 : index
    %85 = vector.load %arg14[%c32, %c0_76] : memref<288x324xbf16, #tpu.memory_space<vmem>>, vector<32x324xbf16>
    tpu.vector_store %arg14[%c32, %c0_76], %84 {strides = array<i32>} : memref<288x324xbf16, #tpu.memory_space<vmem>>, vector<32x324xbf16>,
    %c0_77 = arith.constant 0 : index
    %c2_78 = arith.constant 2 : index
    %86 = vector.load %arg13[%c0_77, %c2_78] : memref<32x362xbf16, #tpu.memory_space<vmem>>, vector<32x324xbf16>
    %c64 = arith.constant 64 : index
    %c0_79 = arith.constant 0 : index
    %87 = vector.load %arg14[%c64, %c0_79] : memref<288x324xbf16, #tpu.memory_space<vmem>>, vector<32x324xbf16>
    tpu.vector_store %arg14[%c64, %c0_79], %86 {strides = array<i32>} : memref<288x324xbf16, #tpu.memory_space<vmem>>, vector<32x324xbf16>,
    %c0_80 = arith.constant 0 : index
    %c18_81 = arith.constant 18 : index
    %88 = vector.load %arg13[%c0_80, %c18_81] : memref<32x362xbf16, #tpu.memory_space<vmem>>, vector<32x324xbf16>
    %c96 = arith.constant 96 : index
    %c0_82 = arith.constant 0 : index
    %89 = vector.load %arg14[%c96, %c0_82] : memref<288x324xbf16, #tpu.memory_space<vmem>>, vector<32x324xbf16>
    tpu.vector_store %arg14[%c96, %c0_82], %88 {strides = array<i32>} : memref<288x324xbf16, #tpu.memory_space<vmem>>, vector<32x324xbf16>,
    %c0_83 = arith.constant 0 : index
    %c19_84 = arith.constant 19 : index
    %90 = vector.load %arg13[%c0_83, %c19_84] : memref<32x362xbf16, #tpu.memory_space<vmem>>, vector<32x324xbf16>
    %c128 = arith.constant 128 : index
    %c0_85 = arith.constant 0 : index
    %91 = vector.load %arg14[%c128, %c0_85] : memref<288x324xbf16, #tpu.memory_space<vmem>>, vector<32x324xbf16>
    tpu.vector_store %arg14[%c128, %c0_85], %90 {strides = array<i32>} : memref<288x324xbf16, #tpu.memory_space<vmem>>, vector<32x324xbf16>,
    %c0_86 = arith.constant 0 : index
    %c20_87 = arith.constant 20 : index
    %92 = vector.load %arg13[%c0_86, %c20_87] : memref<32x362xbf16, #tpu.memory_space<vmem>>, vector<32x324xbf16>
    %c160 = arith.constant 160 : index
    %c0_88 = arith.constant 0 : index
    %93 = vector.load %arg14[%c160, %c0_88] : memref<288x324xbf16, #tpu.memory_space<vmem>>, vector<32x324xbf16>
    tpu.vector_store %arg14[%c160, %c0_88], %92 {strides = array<i32>} : memref<288x324xbf16, #tpu.memory_space<vmem>>, vector<32x324xbf16>,
    %c0_89 = arith.constant 0 : index
    %c36_90 = arith.constant 36 : index
    %94 = vector.load %arg13[%c0_89, %c36_90] : memref<32x362xbf16, #tpu.memory_space<vmem>>, vector<32x324xbf16>
    %c192 = arith.constant 192 : index
    %c0_91 = arith.constant 0 : index
    %95 = vector.load %arg14[%c192, %c0_91] : memref<288x324xbf16, #tpu.memory_space<vmem>>, vector<32x324xbf16>
    tpu.vector_store %arg14[%c192, %c0_91], %94 {strides = array<i32>} : memref<288x324xbf16, #tpu.memory_space<vmem>>, vector<32x324xbf16>,
    %c0_92 = arith.constant 0 : index
    %c37_93 = arith.constant 37 : index
    %96 = vector.load %arg13[%c0_92, %c37_93] : memref<32x362xbf16, #tpu.memory_space<vmem>>, vector<32x324xbf16>
    %c224 = arith.constant 224 : index
    %c0_94 = arith.constant 0 : index
    %97 = vector.load %arg14[%c224, %c0_94] : memref<288x324xbf16, #tpu.memory_space<vmem>>, vector<32x324xbf16>
    tpu.vector_store %arg14[%c224, %c0_94], %96 {strides = array<i32>} : memref<288x324xbf16, #tpu.memory_space<vmem>>, vector<32x324xbf16>,
    %c0_95 = arith.constant 0 : index
    %c38_96 = arith.constant 38 : index
    %98 = vector.load %arg13[%c0_95, %c38_96] : memref<32x362xbf16, #tpu.memory_space<vmem>>, vector<32x324xbf16>
    %c256 = arith.constant 256 : index
    %c0_97 = arith.constant 0 : index
    %99 = vector.load %arg14[%c256, %c0_97] : memref<288x324xbf16, #tpu.memory_space<vmem>>, vector<32x324xbf16>
    tpu.vector_store %arg14[%c256, %c0_97], %98 {strides = array<i32>} : memref<288x324xbf16, #tpu.memory_space<vmem>>, vector<32x324xbf16>,
    %c0_98 = arith.constant 0 : index
    %c0_99 = arith.constant 0 : index
    %100 = vector.load %arg9[%c0_98, %c0_99] : memref<8x288xbf16, #tpu.memory_space<vmem>>, vector<8x288xbf16>
    %c0_100 = arith.constant 0 : index
    %c0_101 = arith.constant 0 : index
    %101 = vector.load %arg14[%c0_100, %c0_101] : memref<288x324xbf16, #tpu.memory_space<vmem>>, vector<288x324xbf16>
    %cst_102 = arith.constant dense<0.000000e+00> : vector<8x324xf32>
    %102 = tpu.matmul %100, %101, %cst_102 {dimension_numbers = #tpu.dot_dimension_numbers<[1], [0], [0], [1], [0, 0, 1, 1], [], []>} : vector<8x288xbf16>, vector<288x324xbf16>, vector<8x324xf32> -> vector<8x324xf32>
    %c0_103 = arith.constant 0 : index
    %c0_104 = arith.constant 0 : index
    %103 = vector.load %arg10[%c0_103, %c0_104] : memref<8x1xf32, #tpu.memory_space<vmem>>, vector<8x1xf32>
    %104 = vector.broadcast %103 : vector<8x1xf32> to vector<8x324xf32>
    %105 = arith.mulf %102, %104 : vector<8x324xf32>
    %c0_105 = arith.constant 0 : index
    %c0_106 = arith.constant 0 : index
    %106 = vector.load %arg11[%c0_105, %c0_106] : memref<8x1xf32, #tpu.memory_space<vmem>>, vector<8x1xf32>
    %107 = vector.broadcast %106 : vector<8x1xf32> to vector<8x324xf32>
    %108 = arith.addf %105, %107 : vector<8x324xf32>
    %c0_107 = arith.constant 0 : index
    %c0_108 = arith.constant 0 : index
    %c0_109 = arith.constant 0 : index
    %109 = vector.load %arg12[%c0_107, %c0_108, %c0_109] : memref<1x8x324xf32, #tpu.memory_space<vmem>>, vector<1x8x324xf32>
    %110 = vector.shape_cast %109 : vector<1x8x324xf32> to vector<8x324xf32>
    %111 = vector.shape_cast %108 : vector<8x324xf32> to vector<1x8x324xf32>
    tpu.vector_store %arg12[%c0_107, %c0_108, %c0_109], %111 {strides = array<i32>} : memref<1x8x324xf32, #tpu.memory_space<vmem>>, vector<1x8x324xf32>,
    return
  }
  func.func @transform_0(%arg0: i32) -> (i32, i32, i32) {
    %c0_i32 = arith.constant 0 : i32
    %c0_i32_0 = arith.constant 0 : i32
    %c0_i32_1 = arith.constant 0 : i32
    return %arg0, %c0_i32, %c0_i32_0 : i32, i32, i32
  }
  func.func @transform_1(%arg0: i32) -> (i32, i32) {
    %c0_i32 = arith.constant 0 : i32
    %c0_i32_0 = arith.constant 0 : i32
    %c0_i32_1 = arith.constant 0 : i32
    return %c0_i32, %c0_i32_0 : i32, i32
  }
  func.func @transform_2(%arg0: i32) -> (i32, i32, i32) {
    %c0_i32 = arith.constant 0 : i32
    %c0_i32_0 = arith.constant 0 : i32
    %c0_i32_1 = arith.constant 0 : i32
    %c0_i32_2 = arith.constant 0 : i32
    return %c0_i32, %c0_i32_0, %c0_i32_1 : i32, i32, i32
  }
  func.func @transform_3(%arg0: i32) -> (i32, i32) {
    %c0_i32 = arith.constant 0 : i32
    %c0_i32_0 = arith.constant 0 : i32
    %c0_i32_1 = arith.constant 0 : i32
    return %c0_i32, %c0_i32_0 : i32, i32
  }
  func.func @transform_4(%arg0: i32) -> (i32, i32) {
    %c0_i32 = arith.constant 0 : i32
    %c0_i32_0 = arith.constant 0 : i32
    %c0_i32_1 = arith.constant 0 : i32
    return %c0_i32, %c0_i32_0 : i32, i32
  }
  func.func @transform_5(%arg0: i32) -> (i32, i32) {
    %c0_i32 = arith.constant 0 : i32
    %c0_i32_0 = arith.constant 0 : i32
    %c0_i32_1 = arith.constant 0 : i32
    return %c0_i32, %c0_i32_0 : i32, i32
  }
  func.func @transform_6(%arg0: i32) -> (i32, i32) {
    %c0_i32 = arith.constant 0 : i32
    %c0_i32_0 = arith.constant 0 : i32
    %c0_i32_1 = arith.constant 0 : i32
    return %c0_i32, %c0_i32_0 : i32, i32
  }
  func.func @transform_7(%arg0: i32) -> (i32, i32) {
    %c0_i32 = arith.constant 0 : i32
    %c0_i32_0 = arith.constant 0 : i32
    %c0_i32_1 = arith.constant 0 : i32
    return %c0_i32, %c0_i32_0 : i32, i32
  }
  func.func @transform_8(%arg0: i32) -> (i32, i32) {
    %c0_i32 = arith.constant 0 : i32
    %c0_i32_0 = arith.constant 0 : i32
    %c0_i32_1 = arith.constant 0 : i32
    return %c0_i32, %c0_i32_0 : i32, i32
  }
  func.func @transform_9(%arg0: i32) -> (i32, i32) {
    %c0_i32 = arith.constant 0 : i32
    %c0_i32_0 = arith.constant 0 : i32
    %c0_i32_1 = arith.constant 0 : i32
    return %c0_i32, %c0_i32_0 : i32, i32
  }
  func.func @transform_10(%arg0: i32) -> (i32, i32) {
    %c0_i32 = arith.constant 0 : i32
    %c0_i32_0 = arith.constant 0 : i32
    %c0_i32_1 = arith.constant 0 : i32
    return %c0_i32, %c0_i32_0 : i32, i32
  }
  func.func @transform_11(%arg0: i32) -> (i32, i32, i32) {
    %c0_i32 = arith.constant 0 : i32
    %c0_i32_0 = arith.constant 0 : i32
    %c0_i32_1 = arith.constant 0 : i32
    return %arg0, %c0_i32, %c0_i32_0 : i32, i32, i32
  }
}

</mosaic_0001>

<llo_original>
// kernel: conv_block_forward.1
$region0: #{conv_block_forward.1}
  #allocation0 [shape = 'u32[]', space=smem, size = 0x4, offset = 0x4, fixed_abs, tag = 'smem constant byte address 0x4 - core index']
  #allocation1 [shape = 'u32[72,128]{1,0:T(1,128)}', space=vmem, size = 0x9000, scoped, tag = 'internal scratch']
  #allocation2 [shape = 'bf16[32,362]{1,0:T(8,128)(2,1)}', space=vmem, size = 0x6000, scoped, tag = 'scratch operand']
  #allocation3 [shape = 'bf16[288,324]{1,0:T(8,128)(2,1)}', space=vmem, size = 0x36000, scoped, tag = 'scratch operand']
  %s0 = inlined_call_operand.vmem [shape: bf16[2,4,400], index: 0, kind: input, shape index: {}]
  %s1 = inlined_call_operand.vmem [shape: f32[1,362], index: 1, kind: input, shape index: {}]
  %s2 = inlined_call_operand.vmem [shape: bf16[9,32,4], index: 2, kind: input, shape index: {}]
  %s3 = inlined_call_operand.vmem [shape: f32[32,1], index: 3, kind: input, shape index: {}]
  %s4 = inlined_call_operand.vmem [shape: f32[32,1], index: 4, kind: input, shape index: {}]
  %s5 = inlined_call_operand.vmem [shape: bf16[32,32], index: 5, kind: input, shape index: {}]
  %s6 = inlined_call_operand.vmem [shape: f32[32,1], index: 6, kind: input, shape index: {}]
  %s7 = inlined_call_operand.vmem [shape: f32[32,1], index: 7, kind: input, shape index: {}]
  %s8 = inlined_call_operand.vmem [shape: bf16[8,288], index: 8, kind: input, shape index: {}]
  %s9 = inlined_call_operand.vmem [shape: f32[8,1], index: 9, kind: input, shape index: {}]
  %s10 = inlined_call_operand.vmem [shape: f32[8,1], index: 10, kind: input, shape index: {}]
  %s11 = inlined_call_operand.vmem [shape: f32[2,8,324], index: 11, kind: output, shape index: {}]
  %s12 = sld [smem:[#allocation0]]
  $region77: #{conv_block_forward.1} parent=0
    _
  %s14 = ssub.s32 1, %s12
  %s15 = scalar_select 0, %s14, %s12
  loop: start=0, step=1, limit=4
  $region2: #{conv_block_forward.1} parent=0 // loop_pre_header
    _
  $region3: #{conv_block_forward.1} parent=0 // loop_header
    %s17 = sphi 0, %s21
    %p18 = scmp.ge.s32.totalorder %s17, 4
    %s27 = sphi 0, %s29
    %s30 = sphi 0, %s27
    %s31 = sphi 0, %s30
    %s47 = sphi 0, %s31
    %s51 = sphi 0, %s51
    %s53 = sphi 0, %s51
    %s54 = sphi 0, %s53
    %s68 = sphi 0, %s54
    %s72 = sphi 0, %s72
    %s74 = sphi 0, %s72
    %s75 = sphi 0, %s74
    %s89 = sphi 0, %s75
    %s93 = sphi 0, %s93
    %s95 = sphi 0, %s93
    %s96 = sphi 0, %s95
    %s110 = sphi 0, %s96
    %s114 = sphi 0, %s114
    %s116 = sphi 0, %s114
    %s117 = sphi 0, %s116
    %s131 = sphi 0, %s117
    %s135 = sphi 0, %s135
    %s137 = sphi 0, %s135
    %s138 = sphi 0, %s137
    %s152 = sphi 0, %s138
    %s156 = sphi 0, %s156
    %s158 = sphi 0, %s156
    %s159 = sphi 0, %s158
    %s173 = sphi 0, %s159
    %s177 = sphi 0, %s177
    %s179 = sphi 0, %s177
    %s180 = sphi 0, %s179
    %s194 = sphi 0, %s180
    %s198 = sphi 0, %s198
    %s200 = sphi 0, %s198
    %s201 = sphi 0, %s200
    %s215 = sphi 0, %s201
    %s219 = sphi 0, %s219
    %s221 = sphi 0, %s219
    %s222 = sphi 0, %s221
    %s236 = sphi 0, %s222
    %s240 = sphi 0, %s240
    %s242 = sphi 0, %s240
    %s243 = sphi 0, %s242
    %s257 = sphi 0, %s243
    %s263 = sphi 0, %s265
    %s266 = sphi 0, %s263
    %s267 = sphi 0, %s266
    %s283 = sphi 0, %s267
  $region4: #{conv_block_forward.1} parent=0 // loop_header_branch
    %20 = sbr.rel (%p18) target = $region8
  $region5: #{conv_block_forward.1} parent=0 // loop_body
    %s22 = ssub.s32 %s17, 1
    %s23 = ssub.s32 %s17, 2
    %s24 = sadd.s32 %s17, 1
    %s25 = ssub.s32 %s17, %s24
    %p26 = scmp.eq.s32.totalorder %s25, 0
    %s28 = sadd.s32 %s27, 1
    %s29 = scalar_select %p26, %s27, %s28
    %p32 = pneg %p26
    %p33 = scmp.eq.s32.totalorder %s17, 1
    %p34 = por %p32, %p33
    %p35 = scmp.ne.s32.totalorder %s27, %s30
    %p36 = scmp.eq.s32.totalorder %s17, 0
    %p37 = por %p35, %p36
    %p38 = scmp.ne.s32.totalorder %s27, %s30
    %p39 = scmp.eq.s32.totalorder %s22, 1
    %p40 = por %p38, %p39
    %p41 = scmp.ne.s32.totalorder %s30, %s31
    %p42 = scmp.eq.s32.totalorder %s22, 0
    %p43 = por %p41, %p42
    %p44 = scmp.ne.s32.totalorder %s30, %s31
    %p45 = scmp.eq.s32.totalorder %s23, 1
    %p46 = por %p44, %p45
    %p48 = scmp.ne.s32.totalorder %s31, %s47
    %p49 = scmp.eq.s32.totalorder %s23, 0
    %p50 = por %p48, %p49
    %s52 = sadd.s32 %s51, 1
    %p55 = scmp.eq.s32.totalorder %s17, 1
    %p56 = scmp.ne.s32.totalorder %s51, %s53
    %p57 = scmp.eq.s32.totalorder %s17, 0
    %p58 = por %p56, %p57
    %p59 = scmp.ne.s32.totalorder %s51, %s53
    %p60 = scmp.eq.s32.totalorder %s22, 1
    %p61 = por %p59, %p60
    %p62 = scmp.ne.s32.totalorder %s53, %s54
    %p63 = scmp.eq.s32.totalorder %s22, 0
    %p64 = por %p62, %p63
    %p65 = scmp.ne.s32.totalorder %s53, %s54
    %p66 = scmp.eq.s32.totalorder %s23, 1
    %p67 = por %p65, %p66
    %p69 = scmp.ne.s32.totalorder %s54, %s68
    %p70 = scmp.eq.s32.totalorder %s23, 0
    %p71 = por %p69, %p70
    %s73 = sadd.s32 %s72, 1
    %p76 = scmp.eq.s32.totalorder %s17, 1
    %p77 = scmp.ne.s32.totalorder %s72, %s74
    %p78 = scmp.eq.s32.totalorder %s17, 0
    %p79 = por %p77, %p78
    %p80 = scmp.ne.s32.totalorder %s72, %s74
    %p81 = scmp.eq.s32.totalorder %s22, 1
    %p82 = por %p80, %p81
    %p83 = scmp.ne.s32.totalorder %s74, %s75
    %p84 = scmp.eq.s32.totalorder %s22, 0
    %p85 = por %p83, %p84
    %p86 = scmp.ne.s32.totalorder %s74, %s75
    %p87 = scmp.eq.s32.totalorder %s23, 1
    %p88 = por %p86, %p87
    %p90 = scmp.ne.s32.totalorder %s75, %s89
    %p91 = scmp.eq.s32.totalorder %s23, 0
    %p92 = por %p90, %p91
    %s94 = sadd.s32 %s93, 1
    %p97 = scmp.eq.s32.totalorder %s17, 1
    %p98 = scmp.ne.s32.totalorder %s93, %s95
    %p99 = scmp.eq.s32.totalorder %s17, 0
    %p100 = por %p98, %p99
    %p101 = scmp.ne.s32.totalorder %s93, %s95
    %p102 = scmp.eq.s32.totalorder %s22, 1
    %p103 = por %p101, %p102
    %p104 = scmp.ne.s32.totalorder %s95, %s96
    %p105 = scmp.eq.s32.totalorder %s22, 0
    %p106 = por %p104, %p105
    %p107 = scmp.ne.s32.totalorder %s95, %s96
    %p108 = scmp.eq.s32.totalorder %s23, 1
    %p109 = por %p107, %p108
    %p111 = scmp.ne.s32.totalorder %s96, %s110
    %p112 = scmp.eq.s32.totalorder %s23, 0
    %p113 = por %p111, %p112
    %s115 = sadd.s32 %s114, 1
    %p118 = scmp.eq.s32.totalorder %s17, 1
    %p119 = scmp.ne.s32.totalorder %s114, %s116
    %p120 = scmp.eq.s32.totalorder %s17, 0
    %p121 = por %p119, %p120
    %p122 = scmp.ne.s32.totalorder %s114, %s116
    %p123 = scmp.eq.s32.totalorder %s22, 1
    %p124 = por %p122, %p123
    %p125 = scmp.ne.s32.totalorder %s116, %s117
    %p126 = scmp.eq.s32.totalorder %s22, 0
    %p127 = por %p125, %p126
    %p128 = scmp.ne.s32.totalorder %s116, %s117
    %p129 = scmp.eq.s32.totalorder %s23, 1
    %p130 = por %p128, %p129
    %p132 = scmp.ne.s32.totalorder %s117, %s131
    %p133 = scmp.eq.s32.totalorder %s23, 0
    %p134 = por %p132, %p133
    %s136 = sadd.s32 %s135, 1
    %p139 = scmp.eq.s32.totalorder %s17, 1
    %p140 = scmp.ne.s32.totalorder %s135, %s137
    %p141 = scmp.eq.s32.totalorder %s17, 0
    %p142 = por %p140, %p141
    %p143 = scmp.ne.s32.totalorder %s135, %s137
    %p144 = scmp.eq.s32.totalorder %s22, 1
    %p145 = por %p143, %p144
    %p146 = scmp.ne.s32.totalorder %s137, %s138
    %p147 = scmp.eq.s32.totalorder %s22, 0
    %p148 = por %p146, %p147
    %p149 = scmp.ne.s32.totalorder %s137, %s138
    %p150 = scmp.eq.s32.totalorder %s23, 1
    %p151 = por %p149, %p150
    %p153 = scmp.ne.s32.totalorder %s138, %s152
    %p154 = scmp.eq.s32.totalorder %s23, 0
    %p155 = por %p153, %p154
    %s157 = sadd.s32 %s156, 1
    %p160 = scmp.eq.s32.totalorder %s17, 1
    %p161 = scmp.ne.s32.totalorder %s156, %s158
    %p162 = scmp.eq.s32.totalorder %s17, 0
    %p163 = por %p161, %p162
    %p164 = scmp.ne.s32.totalorder %s156, %s158
    %p165 = scmp.eq.s32.totalorder %s22, 1
    %p166 = por %p164, %p165
    %p167 = scmp.ne.s32.totalorder %s158, %s159
    %p168 = scmp.eq.s32.totalorder %s22, 0
    %p169 = por %p167, %p168
    %p170 = scmp.ne.s32.totalorder %s158, %s159
    %p171 = scmp.eq.s32.totalorder %s23, 1
    %p172 = por %p170, %p171
    %p174 = scmp.ne.s32.totalorder %s159, %s173
    %p175 = scmp.eq.s32.totalorder %s23, 0
    %p176 = por %p174, %p175
    %s178 = sadd.s32 %s177, 1
    %p181 = scmp.eq.s32.totalorder %s17, 1
    %p182 = scmp.ne.s32.totalorder %s177, %s179
    %p183 = scmp.eq.s32.totalorder %s17, 0
    %p184 = por %p182, %p183
    %p185 = scmp.ne.s32.totalorder %s177, %s179
    %p186 = scmp.eq.s32.totalorder %s22, 1
    %p187 = por %p185, %p186
    %p188 = scmp.ne.s32.totalorder %s179, %s180
    %p189 = scmp.eq.s32.totalorder %s22, 0
    %p190 = por %p188, %p189
    %p191 = scmp.ne.s32.totalorder %s179, %s180
    %p192 = scmp.eq.s32.totalorder %s23, 1
    %p193 = por %p191, %p192
    %p195 = scmp.ne.s32.totalorder %s180, %s194
    %p196 = scmp.eq.s32.totalorder %s23, 0
    %p197 = por %p195, %p196
    %s199 = sadd.s32 %s198, 1
    %p202 = scmp.eq.s32.totalorder %s17, 1
    %p203 = scmp.ne.s32.totalorder %s198, %s200
    %p204 = scmp.eq.s32.totalorder %s17, 0
    %p205 = por %p203, %p204
    %p206 = scmp.ne.s32.totalorder %s198, %s200
    %p207 = scmp.eq.s32.totalorder %s22, 1
    %p208 = por %p206, %p207
    %p209 = scmp.ne.s32.totalorder %s200, %s201
    %p210 = scmp.eq.s32.totalorder %s22, 0
    %p211 = por %p209, %p210
    %p212 = scmp.ne.s32.totalorder %s200, %s201
    %p213 = scmp.eq.s32.totalorder %s23, 1
    %p214 = por %p212, %p213
    %p216 = scmp.ne.s32.totalorder %s201, %s215
    %p217 = scmp.eq.s32.totalorder %s23, 0
    %p218 = por %p216, %p217
    %s220 = sadd.s32 %s219, 1
    %p223 = scmp.eq.s32.totalorder %s17, 1
    %p224 = scmp.ne.s32.totalorder %s219, %s221
    %p225 = scmp.eq.s32.totalorder %s17, 0
    %p226 = por %p224, %p225
    %p227 = scmp.ne.s32.totalorder %s219, %s221
    %p228 = scmp.eq.s32.totalorder %s22, 1
    %p229 = por %p227, %p228
    %p230 = scmp.ne.s32.totalorder %s221, %s222
    %p231 = scmp.eq.s32.totalorder %s22, 0
    %p232 = por %p230, %p231
    %p233 = scmp.ne.s32.totalorder %s221, %s222
    %p234 = scmp.eq.s32.totalorder %s23, 1
    %p235 = por %p233, %p234
    %p237 = scmp.ne.s32.totalorder %s222, %s236
    %p238 = scmp.eq.s32.totalorder %s23, 0
    %p239 = por %p237, %p238
    %s241 = sadd.s32 %s240, 1
    %p244 = scmp.eq.s32.totalorder %s17, 1
    %p245 = scmp.ne.s32.totalorder %s240, %s242
    %p246 = scmp.eq.s32.totalorder %s17, 0
    %p247 = por %p245, %p246
    %p248 = scmp.ne.s32.totalorder %s240, %s242
    %p249 = scmp.eq.s32.totalorder %s22, 1
    %p250 = por %p248, %p249
    %p251 = scmp.ne.s32.totalorder %s242, %s243
    %p252 = scmp.eq.s32.totalorder %s22, 0
    %p253 = por %p251, %p252
    %p254 = scmp.ne.s32.totalorder %s242, %s243
    %p255 = scmp.eq.s32.totalorder %s23, 1
    %p256 = por %p254, %p255
    %p258 = scmp.ne.s32.totalorder %s243, %s257
    %p259 = scmp.eq.s32.totalorder %s23, 0
    %p260 = por %p258, %p259
    %s261 = ssub.s32 %s17, %s24
    %p262 = scmp.eq.s32.totalorder %s261, 0
    %s264 = sadd.s32 %s263, 1
    %s265 = scalar_select %p262, %s263, %s264
    %p268 = pneg %p262
    %p269 = scmp.eq.s32.totalorder %s17, 1
    %p270 = por %p268, %p269
    %p271 = scmp.ne.s32.totalorder %s263, %s266
    %p272 = scmp.eq.s32.totalorder %s17, 0
    %p273 = por %p271, %p272
    %p274 = scmp.ne.s32.totalorder %s263, %s266
    %p275 = scmp.eq.s32.totalorder %s22, 1
    %p276 = por %p274, %p275
    %p277 = scmp.ne.s32.totalorder %s266, %s267
    %p278 = scmp.eq.s32.totalorder %s22, 0
    %p279 = por %p277, %p278
    %p280 = scmp.ne.s32.totalorder %s266, %s267
    %p281 = scmp.eq.s32.totalorder %s23, 1
    %p282 = por %p280, %p281
    %p284 = scmp.ne.s32.totalorder %s267, %s283
    %p285 = scmp.eq.s32.totalorder %s23, 0
    %p286 = por %p284, %p285
    %p287 = scmp.le.s32.totalorder 1, %s17
    %p288 = scmp.lt.s32.totalorder %s17, 3
    %p289 = pnand %p287, %p288
    %p290 = pneg %p289
    // Predicated region
    $region9: #{conv_block_forward.1} parent=5 // pred_check
      _
    $region10: #{conv_block_forward.1} parent=5 // pred_check_branch
      %292 = sbr.rel (%p289) target = $region12
    $region11: #{conv_block_forward.1} parent=5 // pred_region
      %s293 = ssub.s32 %s17, 1
      // Predicated region
      $region13: #{conv_block_forward.1} parent=11 // pred_check
        %p294 = pneg %p64
      $region14: #{conv_block_forward.1} parent=11 // pred_check_branch
        %296 = sbr.rel (%p294) target = $region16
      $region15: #{conv_block_forward.1} parent=11 // pred_region
        _
      $region16: #{conv_block_forward.1} parent=11 // pred_fallthru
        _
      // Predicated region
      $region17: #{conv_block_forward.1} parent=11 // pred_check
        %p297 = pneg %p85
      $region18: #{conv_block_forward.1} parent=11 // pred_check_branch
        %299 = sbr.rel (%p297) target = $region20
      $region19: #{conv_block_forward.1} parent=11 // pred_region
        _
      $region20: #{conv_block_forward.1} parent=11 // pred_fallthru
        _
      // Predicated region
      $region21: #{conv_block_forward.1} parent=11 // pred_check
        %p300 = pneg %p106
      $region22: #{conv_block_forward.1} parent=11 // pred_check_branch
        %302 = sbr.rel (%p300) target = $region24
      $region23: #{conv_block_forward.1} parent=11 // pred_region
        _
      $region24: #{conv_block_forward.1} parent=11 // pred_fallthru
        _
      // Predicated region
      $region25: #{conv_block_forward.1} parent=11 // pred_check
        %p303 = pneg %p127
      $region26: #{conv_block_forward.1} parent=11 // pred_check_branch
        %305 = sbr.rel (%p303) target = $region28
      $region27: #{conv_block_forward.1} parent=11 // pred_region
        _
      $region28: #{conv_block_forward.1} parent=11 // pred_fallthru
        _
      // Predicated region
      $region29: #{conv_block_forward.1} parent=11 // pred_check
        %p306 = pneg %p148
      $region30: #{conv_block_forward.1} parent=11 // pred_check_branch
        %308 = sbr.rel (%p306) target = $region32
      $region31: #{conv_block_forward.1} parent=11 // pred_region
        _
      $region32: #{conv_block_forward.1} parent=11 // pred_fallthru
        _
      // Predicated region
      $region33: #{conv_block_forward.1} parent=11 // pred_check
        %p309 = pneg %p169
      $region34: #{conv_block_forward.1} parent=11 // pred_check_branch
        %311 = sbr.rel (%p309) target = $region36
      $region35: #{conv_block_forward.1} parent=11 // pred_region
        _
      $region36: #{conv_block_forward.1} parent=11 // pred_fallthru
        _
      // Predicated region
      $region37: #{conv_block_forward.1} parent=11 // pred_check
        %p312 = pneg %p190
      $region38: #{conv_block_forward.1} parent=11 // pred_check_branch
        %314 = sbr.rel (%p312) target = $region40
      $region39: #{conv_block_forward.1} parent=11 // pred_region
        _
      $region40: #{conv_block_forward.1} parent=11 // pred_fallthru
        _
      // Predicated region
      $region41: #{conv_block_forward.1} parent=11 // pred_check
        %p315 = pneg %p211
      $region42: #{conv_block_forward.1} parent=11 // pred_check_branch
        %317 = sbr.rel (%p315) target = $region44
      $region43: #{conv_block_forward.1} parent=11 // pred_region
        _
      $region44: #{conv_block_forward.1} parent=11 // pred_fallthru
        _
      // Predicated region
      $region45: #{conv_block_forward.1} parent=11 // pred_check
        %p318 = pneg %p232
      $region46: #{conv_block_forward.1} parent=11 // pred_check_branch
        %320 = sbr.rel (%p318) target = $region48
      $region47: #{conv_block_forward.1} parent=11 // pred_region
        _
      $region48: #{conv_block_forward.1} parent=11 // pred_fallthru
        _
      // Predicated region
      $region49: #{conv_block_forward.1} parent=11 // pred_check
        %p321 = pneg %p253
      $region50: #{conv_block_forward.1} parent=11 // pred_check_branch
        %323 = sbr.rel (%p321) target = $region52
      $region51: #{conv_block_forward.1} parent=11 // pred_region
        _
      $region52: #{conv_block_forward.1} parent=11 // pred_fallthru
        _
    $region12: #{conv_block_forward.1} parent=5 // pred_fallthru
      _
    %p324 = scmp.lt.s32.totalorder %s17, 2
    // Predicated region
    $region53: #{conv_block_forward.1} parent=5 // pred_check
      %p325 = pneg %p324
    $region54: #{conv_block_forward.1} parent=5 // pred_check_branch
      %327 = sbr.rel (%p325) target = $region56
    $region55: #{conv_block_forward.1} parent=5 // pred_region
      // Predicated region
      $region57: #{conv_block_forward.1} parent=55 // pred_check
        %p328 = pneg %p37
      $region58: #{conv_block_forward.1} parent=55 // pred_check_branch
        %330 = sbr.rel (%p328) target = $region60
      $region59: #{conv_block_forward.1} parent=55 // pred_region
        %p331 = scmp.lt.s32.totalorder %s17, 1
        %s332 = scalar_select %p331, %s17, 1
        %s333 = smul.addr %s332, 4
        %s334 = smul.addr %s333, 2
        %s335 = scalar_lea.vmem %s0, %s334
      $region60: #{conv_block_forward.1} parent=55 // pred_fallthru
        _
    $region56: #{conv_block_forward.1} parent=5 // pred_fallthru
      _
    %p336 = scmp.le.s32.totalorder 1, %s17
    %p337 = scmp.lt.s32.totalorder %s17, 3
    %p338 = pnand %p336, %p337
    %p339 = pneg %p338
    // Predicated region
    $region61: #{conv_block_forward.1} parent=5 // pred_check
      _
    $region62: #{conv_block_forward.1} parent=5 // pred_check_branch
      %341 = sbr.rel (%p338) target = $region64
    $region63: #{conv_block_forward.1} parent=5 // pred_region
      %s342 = ssub.s32 %s17, 1
      %p343 = scmp.lt.s32.totalorder %s22, 1
      %s344 = scalar_select %p343, %s22, 1
      %s345 = smul.addr %s344, 4
      %s346 = smul.addr %s345, 2
      %s347 = scalar_lea.vmem %s0, %s346
      %p348 = pneg %p43
      %p349 = pneg %p40
      %p350 = pneg %p64
      %p351 = pneg %p61
      %p352 = pneg %p85
      %p353 = pneg %p82
      %p354 = pneg %p106
      %p355 = pneg %p103
      %p356 = pneg %p127
      %p357 = pneg %p124
      %p358 = pneg %p148
      %p359 = pneg %p145
      %p360 = pneg %p169
      %p361 = pneg %p166
      %p362 = pneg %p190
      %p363 = pneg %p187
      %p364 = pneg %p211
      %p365 = pneg %p208
      %p366 = pneg %p232
      %p367 = pneg %p229
      %p368 = pneg %p253
      %p369 = pneg %p250
      %p370 = pneg %p279
      %p371 = pneg %p276
      %p372 = scmp.lt.s32.totalorder %s22, 1
      %s373 = scalar_select %p372, %s22, 1
      %s374 = smul.addr %s373, 3
      %s375 = smul.addr %s374, 8
      %s376 = scalar_lea.vmem %s11, %s375
      %p377 = scmp.lt.s32.totalorder %s22, 1
      %s378 = scalar_select %p377, %s22, 1
      %s379 = smul.addr %s378, 4
      %s380 = smul.addr %s379, 2
      %s381 = scalar_lea.vmem %s0, %s380
      %p382 = scmp.lt.s32.totalorder %s22, 1
      %s383 = scalar_select %p382, %s22, 1
      %s384 = smul.addr %s383, 3
      %s385 = smul.addr %s384, 8
      %s386 = scalar_lea.vmem %s11, %s385
      %v388 = vld [vmem:[%s2] sm:$0xf]
      %v389 = vld [vmem:[%s2 + $0x4] sm:$0xf]
      %v390 = vld [vmem:[%s2 + $0x8] sm:$0xf]
      %v391 = vld [vmem:[%s2 + $0xc] sm:$0xf]
      %v392 = vld [vmem:[%s381] sm:$0x3f]
      %s393 = scalar_lea.vmem %s2, 16
      %v394 = vld [vmem:[%s393] sm:$0xf]
      %v395 = vld [vmem:[%s393 + $0x4] sm:$0xf]
      %v396 = vld [vmem:[%s393 + $0x8] sm:$0xf]
      %v397 = vld [vmem:[%s393 + $0xc] sm:$0xf]
      %v402 = vunpack.c.l.b16 %v394
      %v403 = vunpack.c.l.b16 %v395
      %v404 = vunpack.c.l.b16 %v396
      %v405 = vunpack.c.l.b16 %v397
      %v406 = vpack.c.b16 %v403, %v402
      %v407 = vpack.c.b16 %v405, %v404
      %409 = vst [vmem:[#allocation1] ss:$4 sm:$0xff] %v392
      %v410 = vld.sshfl [vmem:[#allocation1] sm:$0xff pattern:$0x73625140]
      %v412 = vld.sshfl [vmem:[#allocation1 + $0x8] sm:$0xff pattern:$0x73625140]
      %v414 = vld.sshfl [vmem:[#allocation1 + $0x10] sm:$0xff pattern:$0x73625140]
      %416 = vrot.lane.b32.xlu0 %v410, 127
      %v417 = vpop.permute.xlu0 %416
      %418 = vrot.lane.b32.xlu0 %v412, 127
      %v419 = vpop.permute.xlu0 %418
      %420 = vrot.lane.b32.xlu0 %v414, 127
      %v421 = vpop.permute.xlu0 %420
      %vm422 = vcmask 1039360
      %v423 = vsel %vm422, %v417, %v419
      %v424 = vsel %vm422, %v419, %v421
      %vm425 = vcmask 31744
      %v427 = vsel %vm425, %v406, 0
      %v430 = vsel %vm425, %v407, 0
      %vm432 = vcmask 1041408
      %v434 = vsel %vm432, %v423, 0
      %v437 = vsel %vm432, %v424, 0
      %v440 = vsel %vm432, %v421, 0
      %442 = vmatpush.bf16.msra.mxu0 0
      %443 = vmatpush.bf16.msra.mxu0 0
      %444 = vmatpush.bf16.msra.mxu0 0
      %445 = vmatpush.bf16.msra.mxu0 0
      %446 = vmatpush.bf16.msra.mxu0 0
      %447 = vmatpush.bf16.msra.mxu0 0
      %448 = vmatpush.bf16.msra.mxu0 0
      %449 = vmatpush.bf16.msra.mxu0 %v434
      %450 = vmatmul.bf16.gmra.mxu0 %v427
      %v451 = vpop.f32.mrf.mxu0
      %v452 = vadd.f32 0.0, %v451
      %v453 = vpop.f32.mrf.mxu0
      %v454 = vadd.f32 0.0, %v453
      %455 = vmatmul.bf16.gmra.mxu0 %v430
      %v456 = vpop.f32.mrf.mxu0
      %v457 = vadd.f32 0.0, %v456
      %v458 = vpop.f32.mrf.mxu0
      %v459 = vadd.f32 0.0, %v458
      %460 = vdwg.mxu0
      %461 = vmatpush.bf16.msra.mxu0 0
      %462 = vmatpush.bf16.msra.mxu0 0
      %463 = vmatpush.bf16.msra.mxu0 0
      %464 = vmatpush.bf16.msra.mxu0 0
      %465 = vmatpush.bf16.msra.mxu0 0
      %466 = vmatpush.bf16.msra.mxu0 0
      %467 = vmatpush.bf16.msra.mxu0 0
      %468 = vmatpush.bf16.msra.mxu0 %v437
      %469 = vmatmul.bf16.gmra.mxu0 %v427
      %v470 = vpop.f32.mrf.mxu0
      %v471 = vadd.f32 0.0, %v470
      %v472 = vpop.f32.mrf.mxu0
      %v473 = vadd.f32 0.0, %v472
      %474 = vmatmul.bf16.gmra.mxu0 %v430
      %v475 = vpop.f32.mrf.mxu0
      %v476 = vadd.f32 0.0, %v475
      %v477 = vpop.f32.mrf.mxu0
      %v478 = vadd.f32 0.0, %v477
      %479 = vdwg.mxu0
      %480 = vmatpush.bf16.msra.mxu0 0
      %481 = vmatpush.bf16.msra.mxu0 0
      %482 = vmatpush.bf16.msra.mxu0 0
      %483 = vmatpush.bf16.msra.mxu0 0
      %484 = vmatpush.bf16.msra.mxu0 0
      %485 = vmatpush.bf16.msra.mxu0 0
      %486 = vmatpush.bf16.msra.mxu0 0
      %487 = vmatpush.bf16.msra.mxu0 %v440
      %488 = vmatmul.bf16.gmra.mxu0 %v427
      %v489 = vpop.f32.mrf.mxu0
      %v490 = vadd.f32 0.0, %v489
      %v491 = vpop.f32.mrf.mxu0
      %v492 = vadd.f32 0.0, %v491
      %493 = vmatmul.bf16.gmra.mxu0 %v430
      %v494 = vpop.f32.mrf.mxu0
      %v495 = vadd.f32 0.0, %v494
      %v496 = vpop.f32.mrf.mxu0
      %v497 = vadd.f32 0.0, %v496
      %498 = vdwg.mxu0
      %v503 = vunpack.c.l.b16 %v388
      %v504 = vunpack.c.l.b16 %v389
      %v505 = vunpack.c.l.b16 %v390
      %v506 = vunpack.c.l.b16 %v391
      %v507 = vpack.c.b16 %v504, %v503
      %v508 = vpack.c.b16 %v506, %v505
      %509 = vst [vmem:[#allocation1] ss:$4 sm:$0xff] %v392
      %v510 = vld.sshfl [vmem:[#allocation1] sm:$0xff pattern:$0x73625140]
      %v511 = vld.sshfl [vmem:[#allocation1 + $0x8] sm:$0xff pattern:$0x73625140]
      %v512 = vld.sshfl [vmem:[#allocation1 + $0x10] sm:$0xff pattern:$0x73625140]
      %v514 = vsel %vm425, %v507, 0
      %v517 = vsel %vm425, %v508, 0
      %v519 = vsel %vm432, %v510, 0
      %v521 = vsel %vm432, %v511, 0
      %v523 = vsel %vm432, %v512, 0
      %525 = vmatpush.bf16.msra.mxu0 0
      %526 = vmatpush.bf16.msra.mxu0 0
      %527 = vmatpush.bf16.msra.mxu0 0
      %528 = vmatpush.bf16.msra.mxu0 0
      %529 = vmatpush.bf16.msra.mxu0 0
      %530 = vmatpush.bf16.msra.mxu0 0
      %531 = vmatpush.bf16.msra.mxu0 0
      %532 = vmatpush.bf16.msra.mxu0 %v519
      %533 = vmatmul.bf16.gmra.mxu0 %v514
      %v534 = vpop.f32.mrf.mxu0
      %v535 = vadd.f32 %v452, %v534
      %v536 = vpop.f32.mrf.mxu0
      %v537 = vadd.f32 %v454, %v536
      %538 = vmatmul.bf16.gmra.mxu0 %v517
      %v539 = vpop.f32.mrf.mxu0
      %v540 = vadd.f32 %v457, %v539
      %v541 = vpop.f32.mrf.mxu0
      %v542 = vadd.f32 %v459, %v541
      %543 = vdwg.mxu0
      %544 = vmatpush.bf16.msra.mxu0 0
      %545 = vmatpush.bf16.msra.mxu0 0
      %546 = vmatpush.bf16.msra.mxu0 0
      %547 = vmatpush.bf16.msra.mxu0 0
      %548 = vmatpush.bf16.msra.mxu0 0
      %549 = vmatpush.bf16.msra.mxu0 0
      %550 = vmatpush.bf16.msra.mxu0 0
      %551 = vmatpush.bf16.msra.mxu0 %v521
      %552 = vmatmul.bf16.gmra.mxu0 %v514
      %v553 = vpop.f32.mrf.mxu0
      %v554 = vadd.f32 %v471, %v553
      %v555 = vpop.f32.mrf.mxu0
      %v556 = vadd.f32 %v473, %v555
      %557 = vmatmul.bf16.gmra.mxu0 %v517
      %v558 = vpop.f32.mrf.mxu0
      %v559 = vadd.f32 %v476, %v558
      %v560 = vpop.f32.mrf.mxu0
      %v561 = vadd.f32 %v478, %v560
      %562 = vdwg.mxu0
      %563 = vmatpush.bf16.msra.mxu0 0
      %564 = vmatpush.bf16.msra.mxu0 0
      %565 = vmatpush.bf16.msra.mxu0 0
      %566 = vmatpush.bf16.msra.mxu0 0
      %567 = vmatpush.bf16.msra.mxu0 0
      %568 = vmatpush.bf16.msra.mxu0 0
      %569 = vmatpush.bf16.msra.mxu0 0
      %570 = vmatpush.bf16.msra.mxu0 %v523
      %571 = vmatmul.bf16.gmra.mxu0 %v514
      %v572 = vpop.f32.mrf.mxu0
      %v573 = vadd.f32 %v490, %v572
      %v574 = vpop.f32.mrf.mxu0
      %v575 = vadd.f32 %v492, %v574
      %576 = vmatmul.bf16.gmra.mxu0 %v517
      %v577 = vpop.f32.mrf.mxu0
      %v578 = vadd.f32 %v495, %v577
      %v579 = vpop.f32.mrf.mxu0
      %v580 = vadd.f32 %v497, %v579
      %581 = vdwg.mxu0
      %s582 = scalar_lea.vmem %s2, 32
      %v583 = vld [vmem:[%s582] sm:$0xf]
      %v584 = vld [vmem:[%s582 + $0x4] sm:$0xf]
      %v585 = vld [vmem:[%s582 + $0x8] sm:$0xf]
      %v586 = vld [vmem:[%s582 + $0xc] sm:$0xf]
      %v587 = vld [vmem:[%s381] sm:$0x3f]
      %v592 = vunpack.c.l.b16 %v583
      %v593 = vunpack.c.l.b16 %v584
      %v594 = vunpack.c.l.b16 %v585
      %v595 = vunpack.c.l.b16 %v586
      %v596 = vpack.c.b16 %v593, %v592
      %v597 = vpack.c.b16 %v595, %v594
      %599 = vst [vmem:[#allocation1] ss:$4 sm:$0xff] %v587
      %v600 = vld.sshfl [vmem:[#allocation1] sm:$0xff pattern:$0x73625140]
      %v602 = vld.sshfl [vmem:[#allocation1 + $0x8] sm:$0xff pattern:$0x73625140]
      %v604 = vld.sshfl [vmem:[#allocation1 + $0x10] sm:$0xff pattern:$0x73625140]
      %606 = vrot.lane.b32.xlu0 %v600, 126
      %v607 = vpop.permute.xlu0 %606
      %608 = vrot.lane.b32.xlu0 %v602, 126
      %v609 = vpop.permute.xlu0 %608
      %610 = vrot.lane.b32.xlu0 %v604, 126
      %v611 = vpop.permute.xlu0 %610
      %vm612 = vcmask 1031168
      %v613 = vsel %vm612, %v607, %v609
      %v614 = vsel %vm612, %v609, %v611
      %v616 = vsel %vm425, %v596, 0
      %v619 = vsel %vm425, %v597, 0
      %v622 = vsel %vm432, %v613, 0
      %v625 = vsel %vm432, %v614, 0
      %v628 = vsel %vm432, %v611, 0
      %630 = vmatpush.bf16.msra.mxu0 0
      %631 = vmatpush.bf16.msra.mxu0 0
      %632 = vmatpush.bf16.msra.mxu0 0
      %633 = vmatpush.bf16.msra.mxu0 0
      %634 = vmatpush.bf16.msra.mxu0 0
      %635 = vmatpush.bf16.msra.mxu0 0
      %636 = vmatpush.bf16.msra.mxu0 0
      %637 = vmatpush.bf16.msra.mxu0 %v622
      %638 = vmatmul.bf16.gmra.mxu0 %v616
      %v639 = vpop.f32.mrf.mxu0
      %v640 = vadd.f32 0.0, %v639
      %v641 = vpop.f32.mrf.mxu0
      %v642 = vadd.f32 0.0, %v641
      %643 = vmatmul.bf16.gmra.mxu0 %v619
      %v644 = vpop.f32.mrf.mxu0
      %v645 = vadd.f32 0.0, %v644
      %v646 = vpop.f32.mrf.mxu0
      %v647 = vadd.f32 0.0, %v646
      %648 = vdwg.mxu0
      %649 = vmatpush.bf16.msra.mxu0 0
      %650 = vmatpush.bf16.msra.mxu0 0
      %651 = vmatpush.bf16.msra.mxu0 0
      %652 = vmatpush.bf16.msra.mxu0 0
      %653 = vmatpush.bf16.msra.mxu0 0
      %654 = vmatpush.bf16.msra.mxu0 0
      %655 = vmatpush.bf16.msra.mxu0 0
      %656 = vmatpush.bf16.msra.mxu0 %v625
      %657 = vmatmul.bf16.gmra.mxu0 %v616
      %v658 = vpop.f32.mrf.mxu0
      %v659 = vadd.f32 0.0, %v658
      %v660 = vpop.f32.mrf.mxu0
      %v661 = vadd.f32 0.0, %v660
      %662 = vmatmul.bf16.gmra.mxu0 %v619
      %v663 = vpop.f32.mrf.mxu0
      %v664 = vadd.f32 0.0, %v663
      %v665 = vpop.f32.mrf.mxu0
      %v666 = vadd.f32 0.0, %v665
      %667 = vdwg.mxu0
      %668 = vmatpush.bf16.msra.mxu0 0
      %669 = vmatpush.bf16.msra.mxu0 0
      %670 = vmatpush.bf16.msra.mxu0 0
      %671 = vmatpush.bf16.msra.mxu0 0
      %672 = vmatpush.bf16.msra.mxu0 0
      %673 = vmatpush.bf16.msra.mxu0 0
      %674 = vmatpush.bf16.msra.mxu0 0
      %675 = vmatpush.bf16.msra.mxu0 %v628
      %676 = vmatmul.bf16.gmra.mxu0 %v616
      %v677 = vpop.f32.mrf.mxu0
      %v678 = vadd.f32 0.0, %v677
      %v679 = vpop.f32.mrf.mxu0
      %v680 = vadd.f32 0.0, %v679
      %681 = vmatmul.bf16.gmra.mxu0 %v619
      %v682 = vpop.f32.mrf.mxu0
      %v683 = vadd.f32 0.0, %v682
      %v684 = vpop.f32.mrf.mxu0
      %v685 = vadd.f32 0.0, %v684
      %686 = vdwg.mxu0
      %v687 = vadd.f32 %v535, %v640
      %v688 = vadd.f32 %v554, %v659
      %v689 = vadd.f32 %v573, %v678
      %v690 = vadd.f32 %v537, %v642
      %v691 = vadd.f32 %v556, %v661
      %v692 = vadd.f32 %v575, %v680
      %v693 = vadd.f32 %v540, %v645
      %v694 = vadd.f32 %v559, %v664
      %v695 = vadd.f32 %v578, %v683
      %v696 = vadd.f32 %v542, %v647
      %v697 = vadd.f32 %v561, %v666
      %v698 = vadd.f32 %v580, %v685
      %s699 = scalar_lea.vmem %s2, 48
      %v700 = vld [vmem:[%s699] sm:$0xf]
      %v701 = vld [vmem:[%s699 + $0x4] sm:$0xf]
      %v702 = vld [vmem:[%s699 + $0x8] sm:$0xf]
      %v703 = vld [vmem:[%s699 + $0xc] sm:$0xf]
      %v704 = vld [vmem:[%s381] sm:$0x3f]
      %v709 = vunpack.c.l.b16 %v700
      %v710 = vunpack.c.l.b16 %v701
      %v711 = vunpack.c.l.b16 %v702
      %v712 = vunpack.c.l.b16 %v703
      %v713 = vpack.c.b16 %v710, %v709
      %v714 = vpack.c.b16 %v712, %v711
      %716 = vst [vmem:[#allocation1] ss:$4 sm:$0xff] %v704
      %v717 = vld.sshfl [vmem:[#allocation1] sm:$0xff pattern:$0x73625140]
      %v719 = vld.sshfl [vmem:[#allocation1 + $0x8] sm:$0xff pattern:$0x73625140]
      %v721 = vld.sshfl [vmem:[#allocation1 + $0x10] sm:$0xff pattern:$0x73625140]
      %723 = vrot.lane.b32.xlu0 %v717, 110
      %v724 = vpop.permute.xlu0 %723
      %725 = vrot.lane.b32.xlu0 %v719, 110
      %v726 = vpop.permute.xlu0 %725
      %727 = vrot.lane.b32.xlu0 %v721, 110
      %v728 = vpop.permute.xlu0 %727
      %vm729 = vcmask 900096
      %v730 = vsel %vm729, %v724, %v726
      %v731 = vsel %vm729, %v726, %v728
      %v733 = vsel %vm425, %v713, 0
      %v736 = vsel %vm425, %v714, 0
      %v739 = vsel %vm432, %v730, 0
      %v742 = vsel %vm432, %v731, 0
      %v745 = vsel %vm432, %v728, 0
      %747 = vmatpush.bf16.msra.mxu0 0
      %748 = vmatpush.bf16.msra.mxu0 0
      %749 = vmatpush.bf16.msra.mxu0 0
      %750 = vmatpush.bf16.msra.mxu0 0
      %751 = vmatpush.bf16.msra.mxu0 0
      %752 = vmatpush.bf16.msra.mxu0 0
      %753 = vmatpush.bf16.msra.mxu0 0
      %754 = vmatpush.bf16.msra.mxu0 %v739
      %755 = vmatmul.bf16.gmra.mxu0 %v733
      %v756 = vpop.f32.mrf.mxu0
      %v757 = vadd.f32 0.0, %v756
      %v758 = vpop.f32.mrf.mxu0
      %v759 = vadd.f32 0.0, %v758
      %760 = vmatmul.bf16.gmra.mxu0 %v736
      %v761 = vpop.f32.mrf.mxu0
      %v762 = vadd.f32 0.0, %v761
      %v763 = vpop.f32.mrf.mxu0
      %v764 = vadd.f32 0.0, %v763
      %765 = vdwg.mxu0
      %766 = vmatpush.bf16.msra.mxu0 0
      %767 = vmatpush.bf16.msra.mxu0 0
      %768 = vmatpush.bf16.msra.mxu0 0
      %769 = vmatpush.bf16.msra.mxu0 0
      %770 = vmatpush.bf16.msra.mxu0 0
      %771 = vmatpush.bf16.msra.mxu0 0
      %772 = vmatpush.bf16.msra.mxu0 0
      %773 = vmatpush.bf16.msra.mxu0 %v742
      %774 = vmatmul.bf16.gmra.mxu0 %v733
      %v775 = vpop.f32.mrf.mxu0
      %v776 = vadd.f32 0.0, %v775
      %v777 = vpop.f32.mrf.mxu0
      %v778 = vadd.f32 0.0, %v777
      %779 = vmatmul.bf16.gmra.mxu0 %v736
      %v780 = vpop.f32.mrf.mxu0
      %v781 = vadd.f32 0.0, %v780
      %v782 = vpop.f32.mrf.mxu0
      %v783 = vadd.f32 0.0, %v782
      %784 = vdwg.mxu0
      %785 = vmatpush.bf16.msra.mxu0 0
      %786 = vmatpush.bf16.msra.mxu0 0
      %787 = vmatpush.bf16.msra.mxu0 0
      %788 = vmatpush.bf16.msra.mxu0 0
      %789 = vmatpush.bf16.msra.mxu0 0
      %790 = vmatpush.bf16.msra.mxu0 0
      %791 = vmatpush.bf16.msra.mxu0 0
      %792 = vmatpush.bf16.msra.mxu0 %v745
      %793 = vmatmul.bf16.gmra.mxu0 %v733
      %v794 = vpop.f32.mrf.mxu0
      %v795 = vadd.f32 0.0, %v794
      %v796 = vpop.f32.mrf.mxu0
      %v797 = vadd.f32 0.0, %v796
      %798 = vmatmul.bf16.gmra.mxu0 %v736
      %v799 = vpop.f32.mrf.mxu0
      %v800 = vadd.f32 0.0, %v799
      %v801 = vpop.f32.mrf.mxu0
      %v802 = vadd.f32 0.0, %v801
      %803 = vdwg.mxu0
      %v804 = vadd.f32 %v687, %v757
      %v805 = vadd.f32 %v688, %v776
      %v806 = vadd.f32 %v689, %v795
      %v807 = vadd.f32 %v690, %v759
      %v808 = vadd.f32 %v691, %v778
      %v809 = vadd.f32 %v692, %v797
      %v810 = vadd.f32 %v693, %v762
      %v811 = vadd.f32 %v694, %v781
      %v812 = vadd.f32 %v695, %v800
      %v813 = vadd.f32 %v696, %v764
      %v814 = vadd.f32 %v697, %v783
      %v815 = vadd.f32 %v698, %v802
      %s816 = scalar_lea.vmem %s2, 64
      %v817 = vld [vmem:[%s816] sm:$0xf]
      %v818 = vld [vmem:[%s816 + $0x4] sm:$0xf]
      %v819 = vld [vmem:[%s816 + $0x8] sm:$0xf]
      %v820 = vld [vmem:[%s816 + $0xc] sm:$0xf]
      %v821 = vld [vmem:[%s381] sm:$0x3f]
      %v826 = vunpack.c.l.b16 %v817
      %v827 = vunpack.c.l.b16 %v818
      %v828 = vunpack.c.l.b16 %v819
      %v829 = vunpack.c.l.b16 %v820
      %v830 = vpack.c.b16 %v827, %v826
      %v831 = vpack.c.b16 %v829, %v828
      %833 = vst [vmem:[#allocation1] ss:$4 sm:$0xff] %v821
      %v834 = vld.sshfl [vmem:[#allocation1] sm:$0xff pattern:$0x73625140]
      %v836 = vld.sshfl [vmem:[#allocation1 + $0x8] sm:$0xff pattern:$0x73625140]
      %v838 = vld.sshfl [vmem:[#allocation1 + $0x10] sm:$0xff pattern:$0x73625140]
      %840 = vrot.lane.b32.xlu0 %v834, 109
      %v841 = vpop.permute.xlu0 %840
      %842 = vrot.lane.b32.xlu0 %v836, 109
      %v843 = vpop.permute.xlu0 %842
      %844 = vrot.lane.b32.xlu0 %v838, 109
      %v845 = vpop.permute.xlu0 %844
      %vm846 = vcmask 891904
      %v847 = vsel %vm846, %v841, %v843
      %v848 = vsel %vm846, %v843, %v845
      %v850 = vsel %vm425, %v830, 0
      %v853 = vsel %vm425, %v831, 0
      %v856 = vsel %vm432, %v847, 0
      %v859 = vsel %vm432, %v848, 0
      %v862 = vsel %vm432, %v845, 0
      %864 = vmatpush.bf16.msra.mxu0 0
      %865 = vmatpush.bf16.msra.mxu0 0
      %866 = vmatpush.bf16.msra.mxu0 0
      %867 = vmatpush.bf16.msra.mxu0 0
      %868 = vmatpush.bf16.msra.mxu0 0
      %869 = vmatpush.bf16.msra.mxu0 0
      %870 = vmatpush.bf16.msra.mxu0 0
      %871 = vmatpush.bf16.msra.mxu0 %v856
      %872 = vmatmul.bf16.gmra.mxu0 %v850
      %v873 = vpop.f32.mrf.mxu0
      %v874 = vadd.f32 0.0, %v873
      %v875 = vpop.f32.mrf.mxu0
      %v876 = vadd.f32 0.0, %v875
      %877 = vmatmul.bf16.gmra.mxu0 %v853
      %v878 = vpop.f32.mrf.mxu0
      %v879 = vadd.f32 0.0, %v878
      %v880 = vpop.f32.mrf.mxu0
      %v881 = vadd.f32 0.0, %v880
      %882 = vdwg.mxu0
      %883 = vmatpush.bf16.msra.mxu0 0
      %884 = vmatpush.bf16.msra.mxu0 0
      %885 = vmatpush.bf16.msra.mxu0 0
      %886 = vmatpush.bf16.msra.mxu0 0
      %887 = vmatpush.bf16.msra.mxu0 0
      %888 = vmatpush.bf16.msra.mxu0 0
      %889 = vmatpush.bf16.msra.mxu0 0
      %890 = vmatpush.bf16.msra.mxu0 %v859
      %891 = vmatmul.bf16.gmra.mxu0 %v850
      %v892 = vpop.f32.mrf.mxu0
      %v893 = vadd.f32 0.0, %v892
      %v894 = vpop.f32.mrf.mxu0
      %v895 = vadd.f32 0.0, %v894
      %896 = vmatmul.bf16.gmra.mxu0 %v853
      %v897 = vpop.f32.mrf.mxu0
      %v898 = vadd.f32 0.0, %v897
      %v899 = vpop.f32.mrf.mxu0
      %v900 = vadd.f32 0.0, %v899
      %901 = vdwg.mxu0
      %902 = vmatpush.bf16.msra.mxu0 0
      %903 = vmatpush.bf16.msra.mxu0 0
      %904 = vmatpush.bf16.msra.mxu0 0
      %905 = vmatpush.bf16.msra.mxu0 0
      %906 = vmatpush.bf16.msra.mxu0 0
      %907 = vmatpush.bf16.msra.mxu0 0
      %908 = vmatpush.bf16.msra.mxu0 0
      %909 = vmatpush.bf16.msra.mxu0 %v862
      %910 = vmatmul.bf16.gmra.mxu0 %v850
      %v911 = vpop.f32.mrf.mxu0
      %v912 = vadd.f32 0.0, %v911
      %v913 = vpop.f32.mrf.mxu0
      %v914 = vadd.f32 0.0, %v913
      %915 = vmatmul.bf16.gmra.mxu0 %v853
      %v916 = vpop.f32.mrf.mxu0
      %v917 = vadd.f32 0.0, %v916
      %v918 = vpop.f32.mrf.mxu0
      %v919 = vadd.f32 0.0, %v918
      %920 = vdwg.mxu0
      %v921 = vadd.f32 %v804, %v874
      %v922 = vadd.f32 %v805, %v893
      %v923 = vadd.f32 %v806, %v912
      %v924 = vadd.f32 %v807, %v876
      %v925 = vadd.f32 %v808, %v895
      %v926 = vadd.f32 %v809, %v914
      %v927 = vadd.f32 %v810, %v879
      %v928 = vadd.f32 %v811, %v898
      %v929 = vadd.f32 %v812, %v917
      %v930 = vadd.f32 %v813, %v881
      %v931 = vadd.f32 %v814, %v900
      %v932 = vadd.f32 %v815, %v919
      %s933 = scalar_lea.vmem %s2, 80
      %v934 = vld [vmem:[%s933] sm:$0xf]
      %v935 = vld [vmem:[%s933 + $0x4] sm:$0xf]
      %v936 = vld [vmem:[%s933 + $0x8] sm:$0xf]
      %v937 = vld [vmem:[%s933 + $0xc] sm:$0xf]
      %v938 = vld [vmem:[%s381] sm:$0x3f]
      %v943 = vunpack.c.l.b16 %v934
      %v944 = vunpack.c.l.b16 %v935
      %v945 = vunpack.c.l.b16 %v936
      %v946 = vunpack.c.l.b16 %v937
      %v947 = vpack.c.b16 %v944, %v943
      %v948 = vpack.c.b16 %v946, %v945
      %950 = vst [vmem:[#allocation1] ss:$4 sm:$0xff] %v938
      %v951 = vld.sshfl [vmem:[#allocation1] sm:$0xff pattern:$0x73625140]
      %v953 = vld.sshfl [vmem:[#allocation1 + $0x8] sm:$0xff pattern:$0x73625140]
      %v955 = vld.sshfl [vmem:[#allocation1 + $0x10] sm:$0xff pattern:$0x73625140]
      %957 = vrot.lane.b32.xlu0 %v951, 108
      %v958 = vpop.permute.xlu0 %957
      %959 = vrot.lane.b32.xlu0 %v953, 108
      %v960 = vpop.permute.xlu0 %959
      %961 = vrot.lane.b32.xlu0 %v955, 108
      %v962 = vpop.permute.xlu0 %961
      %vm963 = vcmask 883712
      %v964 = vsel %vm963, %v958, %v960
      %v965 = vsel %vm963, %v960, %v962
      %v967 = vsel %vm425, %v947, 0
      %v970 = vsel %vm425, %v948, 0
      %v973 = vsel %vm432, %v964, 0
      %v976 = vsel %vm432, %v965, 0
      %v979 = vsel %vm432, %v962, 0
      %981 = vmatpush.bf16.msra.mxu0 0
      %982 = vmatpush.bf16.msra.mxu0 0
      %983 = vmatpush.bf16.msra.mxu0 0
      %984 = vmatpush.bf16.msra.mxu0 0
      %985 = vmatpush.bf16.msra.mxu0 0
      %986 = vmatpush.bf16.msra.mxu0 0
      %987 = vmatpush.bf16.msra.mxu0 0
      %988 = vmatpush.bf16.msra.mxu0 %v973
      %989 = vmatmul.bf16.gmra.mxu0 %v967
      %v990 = vpop.f32.mrf.mxu0
      %v991 = vadd.f32 0.0, %v990
      %v992 = vpop.f32.mrf.mxu0
      %v993 = vadd.f32 0.0, %v992
      %994 = vmatmul.bf16.gmra.mxu0 %v970
      %v995 = vpop.f32.mrf.mxu0
      %v996 = vadd.f32 0.0, %v995
      %v997 = vpop.f32.mrf.mxu0
      %v998 = vadd.f32 0.0, %v997
      %999 = vdwg.mxu0
      %1000 = vmatpush.bf16.msra.mxu0 0
      %1001 = vmatpush.bf16.msra.mxu0 0
      %1002 = vmatpush.bf16.msra.mxu0 0
      %1003 = vmatpush.bf16.msra.mxu0 0
      %1004 = vmatpush.bf16.msra.mxu0 0
      %1005 = vmatpush.bf16.msra.mxu0 0
      %1006 = vmatpush.bf16.msra.mxu0 0
      %1007 = vmatpush.bf16.msra.mxu0 %v976
      %1008 = vmatmul.bf16.gmra.mxu0 %v967
      %v1009 = vpop.f32.mrf.mxu0
      %v1010 = vadd.f32 0.0, %v1009
      %v1011 = vpop.f32.mrf.mxu0
      %v1012 = vadd.f32 0.0, %v1011
      %1013 = vmatmul.bf16.gmra.mxu0 %v970
      %v1014 = vpop.f32.mrf.mxu0
      %v1015 = vadd.f32 0.0, %v1014
      %v1016 = vpop.f32.mrf.mxu0
      %v1017 = vadd.f32 0.0, %v1016
      %1018 = vdwg.mxu0
      %1019 = vmatpush.bf16.msra.mxu0 0
      %1020 = vmatpush.bf16.msra.mxu0 0
      %1021 = vmatpush.bf16.msra.mxu0 0
      %1022 = vmatpush.bf16.msra.mxu0 0
      %1023 = vmatpush.bf16.msra.mxu0 0
      %1024 = vmatpush.bf16.msra.mxu0 0
      %1025 = vmatpush.bf16.msra.mxu0 0
      %1026 = vmatpush.bf16.msra.mxu0 %v979
      %1027 = vmatmul.bf16.gmra.mxu0 %v967
      %v1028 = vpop.f32.mrf.mxu0
      %v1029 = vadd.f32 0.0, %v1028
      %v1030 = vpop.f32.mrf.mxu0
      %v1031 = vadd.f32 0.0, %v1030
      %1032 = vmatmul.bf16.gmra.mxu0 %v970
      %v1033 = vpop.f32.mrf.mxu0
      %v1034 = vadd.f32 0.0, %v1033
      %v1035 = vpop.f32.mrf.mxu0
      %v1036 = vadd.f32 0.0, %v1035
      %1037 = vdwg.mxu0
      %v1038 = vadd.f32 %v921, %v991
      %v1039 = vadd.f32 %v922, %v1010
      %v1040 = vadd.f32 %v923, %v1029
      %v1041 = vadd.f32 %v924, %v993
      %v1042 = vadd.f32 %v925, %v1012
      %v1043 = vadd.f32 %v926, %v1031
      %v1044 = vadd.f32 %v927, %v996
      %v1045 = vadd.f32 %v928, %v1015
      %v1046 = vadd.f32 %v929, %v1034
      %v1047 = vadd.f32 %v930, %v998
      %v1048 = vadd.f32 %v931, %v1017
      %v1049 = vadd.f32 %v932, %v1036
      %s1050 = scalar_lea.vmem %s2, 96
      %v1051 = vld [vmem:[%s1050] sm:$0xf]
      %v1052 = vld [vmem:[%s1050 + $0x4] sm:$0xf]
      %v1053 = vld [vmem:[%s1050 + $0x8] sm:$0xf]
      %v1054 = vld [vmem:[%s1050 + $0xc] sm:$0xf]
      %v1055 = vld [vmem:[%s381] sm:$0xff]
      %v1060 = vunpack.c.l.b16 %v1051
      %v1061 = vunpack.c.l.b16 %v1052
      %v1062 = vunpack.c.l.b16 %v1053
      %v1063 = vunpack.c.l.b16 %v1054
      %v1064 = vpack.c.b16 %v1061, %v1060
      %v1065 = vpack.c.b16 %v1063, %v1062
      %1067 = vst [vmem:[#allocation1] ss:$4 sm:$0xff] %v1055
      %v1068 = vld.sshfl [vmem:[#allocation1] sm:$0xff pattern:$0x73625140]
      %v1070 = vld.sshfl [vmem:[#allocation1 + $0x8] sm:$0xff pattern:$0x73625140]
      %v1072 = vld.sshfl [vmem:[#allocation1 + $0x10] sm:$0xff pattern:$0x73625140]
      %v1074 = vld.sshfl [vmem:[#allocation1 + $0x18] sm:$0xff pattern:$0x73625140]
      %1076 = vrot.lane.b32.xlu0 %v1068, 92
      %v1077 = vpop.permute.xlu0 %1076
      %1078 = vrot.lane.b32.xlu0 %v1070, 92
      %v1079 = vpop.permute.xlu0 %1078
      %1080 = vrot.lane.b32.xlu0 %v1072, 92
      %v1081 = vpop.permute.xlu0 %1080
      %1082 = vrot.lane.b32.xlu0 %v1074, 92
      %v1083 = vpop.permute.xlu0 %1082
      %vm1084 = vcmask 752640
      %v1085 = vsel %vm1084, %v1077, %v1079
      %v1086 = vsel %vm1084, %v1079, %v1081
      %v1087 = vsel %vm1084, %v1081, %v1083
      %v1089 = vsel %vm425, %v1064, 0
      %v1092 = vsel %vm425, %v1065, 0
      %v1095 = vsel %vm432, %v1085, 0
      %v1098 = vsel %vm432, %v1086, 0
      %v1101 = vsel %vm432, %v1087, 0
      %1103 = vmatpush.bf16.msra.mxu0 0
      %1104 = vmatpush.bf16.msra.mxu0 0
      %1105 = vmatpush.bf16.msra.mxu0 0
      %1106 = vmatpush.bf16.msra.mxu0 0
      %1107 = vmatpush.bf16.msra.mxu0 0
      %1108 = vmatpush.bf16.msra.mxu0 0
      %1109 = vmatpush.bf16.msra.mxu0 0
      %1110 = vmatpush.bf16.msra.mxu0 %v1095
      %1111 = vmatmul.bf16.gmra.mxu0 %v1089
      %v1112 = vpop.f32.mrf.mxu0
      %v1113 = vadd.f32 0.0, %v1112
      %v1114 = vpop.f32.mrf.mxu0
      %v1115 = vadd.f32 0.0, %v1114
      %1116 = vmatmul.bf16.gmra.mxu0 %v1092
      %v1117 = vpop.f32.mrf.mxu0
      %v1118 = vadd.f32 0.0, %v1117
      %v1119 = vpop.f32.mrf.mxu0
      %v1120 = vadd.f32 0.0, %v1119
      %1121 = vdwg.mxu0
      %1122 = vmatpush.bf16.msra.mxu0 0
      %1123 = vmatpush.bf16.msra.mxu0 0
      %1124 = vmatpush.bf16.msra.mxu0 0
      %1125 = vmatpush.bf16.msra.mxu0 0
      %1126 = vmatpush.bf16.msra.mxu0 0
      %1127 = vmatpush.bf16.msra.mxu0 0
      %1128 = vmatpush.bf16.msra.mxu0 0
      %1129 = vmatpush.bf16.msra.mxu0 %v1098
      %1130 = vmatmul.bf16.gmra.mxu0 %v1089
      %v1131 = vpop.f32.mrf.mxu0
      %v1132 = vadd.f32 0.0, %v1131
      %v1133 = vpop.f32.mrf.mxu0
      %v1134 = vadd.f32 0.0, %v1133
      %1135 = vmatmul.bf16.gmra.mxu0 %v1092
      %v1136 = vpop.f32.mrf.mxu0
      %v1137 = vadd.f32 0.0, %v1136
      %v1138 = vpop.f32.mrf.mxu0
      %v1139 = vadd.f32 0.0, %v1138
      %1140 = vdwg.mxu0
      %1141 = vmatpush.bf16.msra.mxu0 0
      %1142 = vmatpush.bf16.msra.mxu0 0
      %1143 = vmatpush.bf16.msra.mxu0 0
      %1144 = vmatpush.bf16.msra.mxu0 0
      %1145 = vmatpush.bf16.msra.mxu0 0
      %1146 = vmatpush.bf16.msra.mxu0 0
      %1147 = vmatpush.bf16.msra.mxu0 0
      %1148 = vmatpush.bf16.msra.mxu0 %v1101
      %1149 = vmatmul.bf16.gmra.mxu0 %v1089
      %v1150 = vpop.f32.mrf.mxu0
      %v1151 = vadd.f32 0.0, %v1150
      %v1152 = vpop.f32.mrf.mxu0
      %v1153 = vadd.f32 0.0, %v1152
      %1154 = vmatmul.bf16.gmra.mxu0 %v1092
      %v1155 = vpop.f32.mrf.mxu0
      %v1156 = vadd.f32 0.0, %v1155
      %v1157 = vpop.f32.mrf.mxu0
      %v1158 = vadd.f32 0.0, %v1157
      %1159 = vdwg.mxu0
      %v1160 = vadd.f32 %v1038, %v1113
      %v1161 = vadd.f32 %v1039, %v1132
      %v1162 = vadd.f32 %v1040, %v1151
      %v1163 = vadd.f32 %v1041, %v1115
      %v1164 = vadd.f32 %v1042, %v1134
      %v1165 = vadd.f32 %v1043, %v1153
      %v1166 = vadd.f32 %v1044, %v1118
      %v1167 = vadd.f32 %v1045, %v1137
      %v1168 = vadd.f32 %v1046, %v1156
      %v1169 = vadd.f32 %v1047, %v1120
      %v1170 = vadd.f32 %v1048, %v1139
      %v1171 = vadd.f32 %v1049, %v1158
      %s1172 = scalar_lea.vmem %s2, 112
      %v1173 = vld [vmem:[%s1172] sm:$0xf]
      %v1174 = vld [vmem:[%s1172 + $0x4] sm:$0xf]
      %v1175 = vld [vmem:[%s1172 + $0x8] sm:$0xf]
      %v1176 = vld [vmem:[%s1172 + $0xc] sm:$0xf]
      %v1177 = vld [vmem:[%s381] sm:$0xff]
      %v1182 = vunpack.c.l.b16 %v1173
      %v1183 = vunpack.c.l.b16 %v1174
      %v1184 = vunpack.c.l.b16 %v1175
      %v1185 = vunpack.c.l.b16 %v1176
      %v1186 = vpack.c.b16 %v1183, %v1182
      %v1187 = vpack.c.b16 %v1185, %v1184
      %1189 = vst [vmem:[#allocation1] ss:$4 sm:$0xff] %v1177
      %v1190 = vld.sshfl [vmem:[#allocation1] sm:$0xff pattern:$0x73625140]
      %v1192 = vld.sshfl [vmem:[#allocation1 + $0x8] sm:$0xff pattern:$0x73625140]
      %v1194 = vld.sshfl [vmem:[#allocation1 + $0x10] sm:$0xff pattern:$0x73625140]
      %v1196 = vld.sshfl [vmem:[#allocation1 + $0x18] sm:$0xff pattern:$0x73625140]
      %1198 = vrot.lane.b32.xlu0 %v1190, 91
      %v1199 = vpop.permute.xlu0 %1198
      %1200 = vrot.lane.b32.xlu0 %v1192, 91
      %v1201 = vpop.permute.xlu0 %1200
      %1202 = vrot.lane.b32.xlu0 %v1194, 91
      %v1203 = vpop.permute.xlu0 %1202
      %1204 = vrot.lane.b32.xlu0 %v1196, 91
      %v1205 = vpop.permute.xlu0 %1204
      %vm1206 = vcmask 744448
      %v1207 = vsel %vm1206, %v1199, %v1201
      %v1208 = vsel %vm1206, %v1201, %v1203
      %v1209 = vsel %vm1206, %v1203, %v1205
      %v1211 = vsel %vm425, %v1186, 0
      %v1214 = vsel %vm425, %v1187, 0
      %v1217 = vsel %vm432, %v1207, 0
      %v1220 = vsel %vm432, %v1208, 0
      %v1223 = vsel %vm432, %v1209, 0
      %1225 = vmatpush.bf16.msra.mxu0 0
      %1226 = vmatpush.bf16.msra.mxu0 0
      %1227 = vmatpush.bf16.msra.mxu0 0
      %1228 = vmatpush.bf16.msra.mxu0 0
      %1229 = vmatpush.bf16.msra.mxu0 0
      %1230 = vmatpush.bf16.msra.mxu0 0
      %1231 = vmatpush.bf16.msra.mxu0 0
      %1232 = vmatpush.bf16.msra.mxu0 %v1217
      %1233 = vmatmul.bf16.gmra.mxu0 %v1211
      %v1234 = vpop.f32.mrf.mxu0
      %v1235 = vadd.f32 0.0, %v1234
      %v1236 = vpop.f32.mrf.mxu0
      %v1237 = vadd.f32 0.0, %v1236
      %1238 = vmatmul.bf16.gmra.mxu0 %v1214
      %v1239 = vpop.f32.mrf.mxu0
      %v1240 = vadd.f32 0.0, %v1239
      %v1241 = vpop.f32.mrf.mxu0
      %v1242 = vadd.f32 0.0, %v1241
      %1243 = vdwg.mxu0
      %1244 = vmatpush.bf16.msra.mxu0 0
      %1245 = vmatpush.bf16.msra.mxu0 0
      %1246 = vmatpush.bf16.msra.mxu0 0
      %1247 = vmatpush.bf16.msra.mxu0 0
      %1248 = vmatpush.bf16.msra.mxu0 0
      %1249 = vmatpush.bf16.msra.mxu0 0
      %1250 = vmatpush.bf16.msra.mxu0 0
      %1251 = vmatpush.bf16.msra.mxu0 %v1220
      %1252 = vmatmul.bf16.gmra.mxu0 %v1211
      %v1253 = vpop.f32.mrf.mxu0
      %v1254 = vadd.f32 0.0, %v1253
      %v1255 = vpop.f32.mrf.mxu0
      %v1256 = vadd.f32 0.0, %v1255
      %1257 = vmatmul.bf16.gmra.mxu0 %v1214
      %v1258 = vpop.f32.mrf.mxu0
      %v1259 = vadd.f32 0.0, %v1258
      %v1260 = vpop.f32.mrf.mxu0
      %v1261 = vadd.f32 0.0, %v1260
      %1262 = vdwg.mxu0
      %1263 = vmatpush.bf16.msra.mxu0 0
      %1264 = vmatpush.bf16.msra.mxu0 0
      %1265 = vmatpush.bf16.msra.mxu0 0
      %1266 = vmatpush.bf16.msra.mxu0 0
      %1267 = vmatpush.bf16.msra.mxu0 0
      %1268 = vmatpush.bf16.msra.mxu0 0
      %1269 = vmatpush.bf16.msra.mxu0 0
      %1270 = vmatpush.bf16.msra.mxu0 %v1223
      %1271 = vmatmul.bf16.gmra.mxu0 %v1211
      %v1272 = vpop.f32.mrf.mxu0
      %v1273 = vadd.f32 0.0, %v1272
      %v1274 = vpop.f32.mrf.mxu0
      %v1275 = vadd.f32 0.0, %v1274
      %1276 = vmatmul.bf16.gmra.mxu0 %v1214
      %v1277 = vpop.f32.mrf.mxu0
      %v1278 = vadd.f32 0.0, %v1277
      %v1279 = vpop.f32.mrf.mxu0
      %v1280 = vadd.f32 0.0, %v1279
      %1281 = vdwg.mxu0
      %v1282 = vadd.f32 %v1160, %v1235
      %v1283 = vadd.f32 %v1161, %v1254
      %v1284 = vadd.f32 %v1162, %v1273
      %v1285 = vadd.f32 %v1163, %v1237
      %v1286 = vadd.f32 %v1164, %v1256
      %v1287 = vadd.f32 %v1165, %v1275
      %v1288 = vadd.f32 %v1166, %v1240
      %v1289 = vadd.f32 %v1167, %v1259
      %v1290 = vadd.f32 %v1168, %v1278
      %v1291 = vadd.f32 %v1169, %v1242
      %v1292 = vadd.f32 %v1170, %v1261
      %v1293 = vadd.f32 %v1171, %v1280
      %s1294 = scalar_lea.vmem %s2, 128
      %v1295 = vld [vmem:[%s1294] sm:$0xf]
      %v1296 = vld [vmem:[%s1294 + $0x4] sm:$0xf]
      %v1297 = vld [vmem:[%s1294 + $0x8] sm:$0xf]
      %v1298 = vld [vmem:[%s1294 + $0xc] sm:$0xf]
      %v1299 = vld [vmem:[%s381] sm:$0xff]
      %v1304 = vunpack.c.l.b16 %v1295
      %v1305 = vunpack.c.l.b16 %v1296
      %v1306 = vunpack.c.l.b16 %v1297
      %v1307 = vunpack.c.l.b16 %v1298
      %v1308 = vpack.c.b16 %v1305, %v1304
      %v1309 = vpack.c.b16 %v1307, %v1306
      %1311 = vst [vmem:[#allocation1] ss:$4 sm:$0xff] %v1299
      %v1312 = vld.sshfl [vmem:[#allocation1] sm:$0xff pattern:$0x73625140]
      %v1314 = vld.sshfl [vmem:[#allocation1 + $0x8] sm:$0xff pattern:$0x73625140]
      %v1316 = vld.sshfl [vmem:[#allocation1 + $0x10] sm:$0xff pattern:$0x73625140]
      %v1318 = vld.sshfl [vmem:[#allocation1 + $0x18] sm:$0xff pattern:$0x73625140]
      %1320 = vrot.lane.b32.xlu0 %v1312, 90
      %v1321 = vpop.permute.xlu0 %1320
      %1322 = vrot.lane.b32.xlu0 %v1314, 90
      %v1323 = vpop.permute.xlu0 %1322
      %1324 = vrot.lane.b32.xlu0 %v1316, 90
      %v1325 = vpop.permute.xlu0 %1324
      %1326 = vrot.lane.b32.xlu0 %v1318, 90
      %v1327 = vpop.permute.xlu0 %1326
      %vm1328 = vcmask 736256
      %v1329 = vsel %vm1328, %v1321, %v1323
      %v1330 = vsel %vm1328, %v1323, %v1325
      %v1331 = vsel %vm1328, %v1325, %v1327
      %v1333 = vsel %vm425, %v1308, 0
      %v1336 = vsel %vm425, %v1309, 0
      %v1339 = vsel %vm432, %v1329, 0
      %v1342 = vsel %vm432, %v1330, 0
      %v1345 = vsel %vm432, %v1331, 0
      %1347 = vmatpush.bf16.msra.mxu0 0
      %1348 = vmatpush.bf16.msra.mxu0 0
      %1349 = vmatpush.bf16.msra.mxu0 0
      %1350 = vmatpush.bf16.msra.mxu0 0
      %1351 = vmatpush.bf16.msra.mxu0 0
      %1352 = vmatpush.bf16.msra.mxu0 0
      %1353 = vmatpush.bf16.msra.mxu0 0
      %1354 = vmatpush.bf16.msra.mxu0 %v1339
      %1355 = vmatmul.bf16.gmra.mxu0 %v1333
      %v1356 = vpop.f32.mrf.mxu0
      %v1357 = vadd.f32 0.0, %v1356
      %v1358 = vpop.f32.mrf.mxu0
      %v1359 = vadd.f32 0.0, %v1358
      %1360 = vmatmul.bf16.gmra.mxu0 %v1336
      %v1361 = vpop.f32.mrf.mxu0
      %v1362 = vadd.f32 0.0, %v1361
      %v1363 = vpop.f32.mrf.mxu0
      %v1364 = vadd.f32 0.0, %v1363
      %1365 = vdwg.mxu0
      %1366 = vmatpush.bf16.msra.mxu0 0
      %1367 = vmatpush.bf16.msra.mxu0 0
      %1368 = vmatpush.bf16.msra.mxu0 0
      %1369 = vmatpush.bf16.msra.mxu0 0
      %1370 = vmatpush.bf16.msra.mxu0 0
      %1371 = vmatpush.bf16.msra.mxu0 0
      %1372 = vmatpush.bf16.msra.mxu0 0
      %1373 = vmatpush.bf16.msra.mxu0 %v1342
      %1374 = vmatmul.bf16.gmra.mxu0 %v1333
      %v1375 = vpop.f32.mrf.mxu0
      %v1376 = vadd.f32 0.0, %v1375
      %v1377 = vpop.f32.mrf.mxu0
      %v1378 = vadd.f32 0.0, %v1377
      %1379 = vmatmul.bf16.gmra.mxu0 %v1336
      %v1380 = vpop.f32.mrf.mxu0
      %v1381 = vadd.f32 0.0, %v1380
      %v1382 = vpop.f32.mrf.mxu0
      %v1383 = vadd.f32 0.0, %v1382
      %1384 = vdwg.mxu0
      %1385 = vmatpush.bf16.msra.mxu0 0
      %1386 = vmatpush.bf16.msra.mxu0 0
      %1387 = vmatpush.bf16.msra.mxu0 0
      %1388 = vmatpush.bf16.msra.mxu0 0
      %1389 = vmatpush.bf16.msra.mxu0 0
      %1390 = vmatpush.bf16.msra.mxu0 0
      %1391 = vmatpush.bf16.msra.mxu0 0
      %1392 = vmatpush.bf16.msra.mxu0 %v1345
      %1393 = vmatmul.bf16.gmra.mxu0 %v1333
      %v1394 = vpop.f32.mrf.mxu0
      %v1395 = vadd.f32 0.0, %v1394
      %v1396 = vpop.f32.mrf.mxu0
      %v1397 = vadd.f32 0.0, %v1396
      %1398 = vmatmul.bf16.gmra.mxu0 %v1336
      %v1399 = vpop.f32.mrf.mxu0
      %v1400 = vadd.f32 0.0, %v1399
      %v1401 = vpop.f32.mrf.mxu0
      %v1402 = vadd.f32 0.0, %v1401
      %1403 = vdwg.mxu0
      %v1404 = vadd.f32 %v1282, %v1357
      %v1405 = vadd.f32 %v1283, %v1376
      %v1406 = vadd.f32 %v1284, %v1395
      %v1407 = vadd.f32 %v1285, %v1359
      %v1408 = vadd.f32 %v1286, %v1378
      %v1409 = vadd.f32 %v1287, %v1397
      %v1410 = vadd.f32 %v1288, %v1362
      %v1411 = vadd.f32 %v1289, %v1381
      %v1412 = vadd.f32 %v1290, %v1400
      %v1413 = vadd.f32 %v1291, %v1364
      %v1414 = vadd.f32 %v1292, %v1383
      %v1415 = vadd.f32 %v1293, %v1402
      %v1416 = vld [vmem:[%s3] sm:$0xff]
      %v1417 = vld [vmem:[%s3 + $0x8] sm:$0xff]
      %v1418 = vld [vmem:[%s3 + $0x10] sm:$0xff]
      %v1419 = vld [vmem:[%s3 + $0x18] sm:$0xff]
      %1421 = vset.pattern.permute.xlu0 0
      %1422 = vperm.xlu0 %1421, %v1416
      %v1423 = vpop.permute.xlu0 %1422
      %1426 = vset.pattern.permute.xlu0 0
      %1427 = vperm.xlu0 %1426, %v1417
      %v1428 = vpop.permute.xlu0 %1427
      %1431 = vset.pattern.permute.xlu0 0
      %1432 = vperm.xlu0 %1431, %v1418
      %v1433 = vpop.permute.xlu0 %1432
      %1436 = vset.pattern.permute.xlu0 0
      %1437 = vperm.xlu0 %1436, %v1419
      %v1438 = vpop.permute.xlu0 %1437
      %v1440 = vmul.f32 %v1404, %v1423
      %v1441 = vmul.f32 %v1405, %v1423
      %v1442 = vmul.f32 %v1406, %v1423
      %v1443 = vmul.f32 %v1407, %v1428
      %v1444 = vmul.f32 %v1408, %v1428
      %v1445 = vmul.f32 %v1409, %v1428
      %v1446 = vmul.f32 %v1410, %v1433
      %v1447 = vmul.f32 %v1411, %v1433
      %v1448 = vmul.f32 %v1412, %v1433
      %v1449 = vmul.f32 %v1413, %v1438
      %v1450 = vmul.f32 %v1414, %v1438
      %v1451 = vmul.f32 %v1415, %v1438
      %v1452 = vld [vmem:[%s4] sm:$0xff]
      %v1453 = vld [vmem:[%s4 + $0x8] sm:$0xff]
      %v1454 = vld [vmem:[%s4 + $0x10] sm:$0xff]
      %v1455 = vld [vmem:[%s4 + $0x18] sm:$0xff]
      %1457 = vset.pattern.permute.xlu0 0
      %1458 = vperm.xlu0 %1457, %v1452
      %v1459 = vpop.permute.xlu0 %1458
      %1462 = vset.pattern.permute.xlu0 0
      %1463 = vperm.xlu0 %1462, %v1453
      %v1464 = vpop.permute.xlu0 %1463
      %1467 = vset.pattern.permute.xlu0 0
      %1468 = vperm.xlu0 %1467, %v1454
      %v1469 = vpop.permute.xlu0 %1468
      %1472 = vset.pattern.permute.xlu0 0
      %1473 = vperm.xlu0 %1472, %v1455
      %v1474 = vpop.permute.xlu0 %1473
      %v1476 = vadd.f32 %v1440, %v1459
      %v1477 = vadd.f32 %v1441, %v1459
      %v1478 = vadd.f32 %v1442, %v1459
      %v1479 = vadd.f32 %v1443, %v1464
      %v1480 = vadd.f32 %v1444, %v1464
      %v1481 = vadd.f32 %v1445, %v1464
      %v1482 = vadd.f32 %v1446, %v1469
      %v1483 = vadd.f32 %v1447, %v1469
      %v1484 = vadd.f32 %v1448, %v1469
      %v1485 = vadd.f32 %v1449, %v1474
      %v1486 = vadd.f32 %v1450, %v1474
      %v1487 = vadd.f32 %v1451, %v1474
      %v1488 = vmax.f32 %v1476, 0.0
      %v1489 = vmax.f32 %v1477, 0.0
      %v1490 = vmax.f32 %v1478, 0.0
      %v1491 = vmax.f32 %v1479, 0.0
      %v1492 = vmax.f32 %v1480, 0.0
      %v1493 = vmax.f32 %v1481, 0.0
      %v1494 = vmax.f32 %v1482, 0.0
      %v1495 = vmax.f32 %v1483, 0.0
      %v1496 = vmax.f32 %v1484, 0.0
      %v1497 = vmax.f32 %v1485, 0.0
      %v1498 = vmax.f32 %v1486, 0.0
      %v1499 = vmax.f32 %v1487, 0.0
      %v1500 = vld [vmem:[%s1] sm:$0x7]
      %v1502 = vperm.slane %v1500, 0
      %v1503 = vperm.slane %v1500, 1
      %v1504 = vperm.slane %v1500, 2
      %v1508 = vmul.f32 %v1488, %v1502
      %v1509 = vmul.f32 %v1489, %v1503
      %v1510 = vmul.f32 %v1490, %v1504
      %v1511 = vmul.f32 %v1491, %v1502
      %v1512 = vmul.f32 %v1492, %v1503
      %v1513 = vmul.f32 %v1493, %v1504
      %v1514 = vmul.f32 %v1494, %v1502
      %v1515 = vmul.f32 %v1495, %v1503
      %v1516 = vmul.f32 %v1496, %v1504
      %v1517 = vmul.f32 %v1497, %v1502
      %v1518 = vmul.f32 %v1498, %v1503
      %v1519 = vmul.f32 %v1499, %v1504
      %v1520 = vpack.c.bf16 %v1509, %v1508
      %v1521 = vpack.c.bf16 %v1510, %v1510
      %v1522 = vpack.c.bf16 %v1512, %v1511
      %v1523 = vpack.c.bf16 %v1513, %v1513
      %v1524 = vpack.c.bf16 %v1515, %v1514
      %v1525 = vpack.c.bf16 %v1516, %v1516
      %v1526 = vpack.c.bf16 %v1518, %v1517
      %v1527 = vpack.c.bf16 %v1519, %v1519
      %1528 = vst [vmem:[#allocation2] sm:$0xff] %v1520
      %vm1529 = vcmask 863232
      %1530 = vst.msk [vmem:[#allocation2 + $0x8] sm:$0xf] %vm1529, %v1521
      %1531 = vst [vmem:[#allocation2 + $0xc] sm:$0xff] %v1522
      %1532 = vst.msk [vmem:[#allocation2 + $0x14] sm:$0xf] %vm1529, %v1523
      %1533 = vst [vmem:[#allocation2 + $0x18] sm:$0xff] %v1524
      %1534 = vst.msk [vmem:[#allocation2 + $0x20] sm:$0xf] %vm1529, %v1525
      %1535 = vst [vmem:[#allocation2 + $0x24] sm:$0xff] %v1526
      %1536 = vst.msk [vmem:[#allocation2 + $0x2c] sm:$0xf] %vm1529, %v1527
      %v1537 = vld [vmem:[%s5] sm:$0xf]
      %v1538 = vld [vmem:[%s5 + $0x4] sm:$0xf]
      %v1539 = vld [vmem:[%s5 + $0x8] sm:$0xf]
      %v1540 = vld [vmem:[%s5 + $0xc] sm:$0xf]
      %v1541 = vld [vmem:[#allocation2] sm:$0xff]
      %v1542 = vld [vmem:[#allocation2 + $0x8] sm:$0xf]
      %v1543 = vld [vmem:[#allocation2 + $0xc] sm:$0xff]
      %v1544 = vld [vmem:[#allocation2 + $0x14] sm:$0xf]
      %v1545 = vld [vmem:[#allocation2 + $0x18] sm:$0xff]
      %v1546 = vld [vmem:[#allocation2 + $0x20] sm:$0xf]
      %v1547 = vld [vmem:[#allocation2 + $0x24] sm:$0xff]
      %v1548 = vld [vmem:[#allocation2 + $0x2c] sm:$0xf]
      %v1553 = vunpack.c.l.b16 %v1537
      %v1554 = vunpack.c.l.b16 %v1538
      %v1555 = vunpack.c.l.b16 %v1539
      %v1556 = vunpack.c.l.b16 %v1540
      %v1557 = vpack.c.b16 %v1554, %v1553
      %v1558 = vpack.c.b16 %v1556, %v1555
      %v1567 = vunpack.c.l.b16 %v1541
      %v1568 = vunpack.c.h.b16 %v1541
      %v1569 = vunpack.c.l.b16 %v1542
      %v1570 = vunpack.c.l.b16 %v1543
      %v1571 = vunpack.c.h.b16 %v1543
      %v1572 = vunpack.c.l.b16 %v1544
      %v1573 = vunpack.c.l.b16 %v1545
      %v1574 = vunpack.c.h.b16 %v1545
      %v1575 = vunpack.c.l.b16 %v1546
      %v1576 = vunpack.c.l.b16 %v1547
      %v1577 = vunpack.c.h.b16 %v1547
      %v1578 = vunpack.c.l.b16 %v1548
      %v1579 = vpack.c.b16 %v1570, %v1567
      %v1580 = vpack.c.b16 %v1571, %v1568
      %v1581 = vpack.c.b16 %v1572, %v1569
      %v1582 = vpack.c.b16 %v1576, %v1573
      %v1583 = vpack.c.b16 %v1577, %v1574
      %v1584 = vpack.c.b16 %v1578, %v1575
      %vm1591 = vcmask 261120
      %v1593 = vsel %vm1591, %v1557, 0
      %v1596 = vsel %vm1591, %v1558, 0
      %1598 = vmatpush.bf16.msra.mxu0 0
      %1599 = vmatpush.bf16.msra.mxu0 0
      %1600 = vmatpush.bf16.msra.mxu0 0
      %1601 = vmatpush.bf16.msra.mxu0 0
      %1602 = vmatpush.bf16.msra.mxu0 0
      %1603 = vmatpush.bf16.msra.mxu0 0
      %1604 = vmatpush.bf16.msra.mxu0 %v1582
      %1605 = vmatpush.bf16.msra.mxu0 %v1579
      %1606 = vmatmul.bf16.gmra.mxu0 %v1593
      %v1607 = vpop.f32.mrf.mxu0
      %v1608 = vadd.f32 0.0, %v1607
      %v1609 = vpop.f32.mrf.mxu0
      %v1610 = vadd.f32 0.0, %v1609
      %1611 = vmatmul.bf16.gmra.mxu0 %v1596
      %v1612 = vpop.f32.mrf.mxu0
      %v1613 = vadd.f32 0.0, %v1612
      %v1614 = vpop.f32.mrf.mxu0
      %v1615 = vadd.f32 0.0, %v1614
      %1616 = vdwg.mxu0
      %1617 = vmatpush.bf16.msra.mxu0 0
      %1618 = vmatpush.bf16.msra.mxu0 0
      %1619 = vmatpush.bf16.msra.mxu0 0
      %1620 = vmatpush.bf16.msra.mxu0 0
      %1621 = vmatpush.bf16.msra.mxu0 0
      %1622 = vmatpush.bf16.msra.mxu0 0
      %1623 = vmatpush.bf16.msra.mxu0 %v1583
      %1624 = vmatpush.bf16.msra.mxu0 %v1580
      %1625 = vmatmul.bf16.gmra.mxu0 %v1593
      %v1626 = vpop.f32.mrf.mxu0
      %v1627 = vadd.f32 0.0, %v1626
      %v1628 = vpop.f32.mrf.mxu0
      %v1629 = vadd.f32 0.0, %v1628
      %1630 = vmatmul.bf16.gmra.mxu0 %v1596
      %v1631 = vpop.f32.mrf.mxu0
      %v1632 = vadd.f32 0.0, %v1631
      %v1633 = vpop.f32.mrf.mxu0
      %v1634 = vadd.f32 0.0, %v1633
      %1635 = vdwg.mxu0
      %1636 = vmatpush.bf16.msra.mxu0 0
      %1637 = vmatpush.bf16.msra.mxu0 0
      %1638 = vmatpush.bf16.msra.mxu0 0
      %1639 = vmatpush.bf16.msra.mxu0 0
      %1640 = vmatpush.bf16.msra.mxu0 0
      %1641 = vmatpush.bf16.msra.mxu0 0
      %1642 = vmatpush.bf16.msra.mxu0 %v1584
      %1643 = vmatpush.bf16.msra.mxu0 %v1581
      %1644 = vmatmul.bf16.gmra.mxu0 %v1593
      %v1645 = vpop.f32.mrf.mxu0
      %v1646 = vadd.f32 0.0, %v1645
      %v1647 = vpop.f32.mrf.mxu0
      %v1648 = vadd.f32 0.0, %v1647
      %1649 = vmatmul.bf16.gmra.mxu0 %v1596
      %v1650 = vpop.f32.mrf.mxu0
      %v1651 = vadd.f32 0.0, %v1650
      %v1652 = vpop.f32.mrf.mxu0
      %v1653 = vadd.f32 0.0, %v1652
      %1654 = vdwg.mxu0
      %v1655 = vld [vmem:[%s6] sm:$0xff]
      %v1656 = vld [vmem:[%s6 + $0x8] sm:$0xff]
      %v1657 = vld [vmem:[%s6 + $0x10] sm:$0xff]
      %v1658 = vld [vmem:[%s6 + $0x18] sm:$0xff]
      %1660 = vset.pattern.permute.xlu0 0
      %1661 = vperm.xlu0 %1660, %v1655
      %v1662 = vpop.permute.xlu0 %1661
      %1665 = vset.pattern.permute.xlu0 0
      %1666 = vperm.xlu0 %1665, %v1656
      %v1667 = vpop.permute.xlu0 %1666
      %1670 = vset.pattern.permute.xlu0 0
      %1671 = vperm.xlu0 %1670, %v1657
      %v1672 = vpop.permute.xlu0 %1671
      %1675 = vset.pattern.permute.xlu0 0
      %1676 = vperm.xlu0 %1675, %v1658
      %v1677 = vpop.permute.xlu0 %1676
      %v1679 = vmul.f32 %v1608, %v1662
      %v1680 = vmul.f32 %v1627, %v1662
      %v1681 = vmul.f32 %v1646, %v1662
      %v1682 = vmul.f32 %v1610, %v1667
      %v1683 = vmul.f32 %v1629, %v1667
      %v1684 = vmul.f32 %v1648, %v1667
      %v1685 = vmul.f32 %v1613, %v1672
      %v1686 = vmul.f32 %v1632, %v1672
      %v1687 = vmul.f32 %v1651, %v1672
      %v1688 = vmul.f32 %v1615, %v1677
      %v1689 = vmul.f32 %v1634, %v1677
      %v1690 = vmul.f32 %v1653, %v1677
      %v1691 = vld [vmem:[%s7] sm:$0xff]
      %v1692 = vld [vmem:[%s7 + $0x8] sm:$0xff]
      %v1693 = vld [vmem:[%s7 + $0x10] sm:$0xff]
      %v1694 = vld [vmem:[%s7 + $0x18] sm:$0xff]
      %1696 = vset.pattern.permute.xlu0 0
      %1697 = vperm.xlu0 %1696, %v1691
      %v1698 = vpop.permute.xlu0 %1697
      %1701 = vset.pattern.permute.xlu0 0
      %1702 = vperm.xlu0 %1701, %v1692
      %v1703 = vpop.permute.xlu0 %1702
      %1706 = vset.pattern.permute.xlu0 0
      %1707 = vperm.xlu0 %1706, %v1693
      %v1708 = vpop.permute.xlu0 %1707
      %1711 = vset.pattern.permute.xlu0 0
      %1712 = vperm.xlu0 %1711, %v1694
      %v1713 = vpop.permute.xlu0 %1712
      %v1715 = vadd.f32 %v1679, %v1698
      %v1716 = vadd.f32 %v1680, %v1698
      %v1717 = vadd.f32 %v1681, %v1698
      %v1718 = vadd.f32 %v1682, %v1703
      %v1719 = vadd.f32 %v1683, %v1703
      %v1720 = vadd.f32 %v1684, %v1703
      %v1721 = vadd.f32 %v1685, %v1708
      %v1722 = vadd.f32 %v1686, %v1708
      %v1723 = vadd.f32 %v1687, %v1708
      %v1724 = vadd.f32 %v1688, %v1713
      %v1725 = vadd.f32 %v1689, %v1713
      %v1726 = vadd.f32 %v1690, %v1713
      %v1727 = vmax.f32 %v1715, 0.0
      %v1728 = vmax.f32 %v1716, 0.0
      %v1729 = vmax.f32 %v1717, 0.0
      %v1730 = vmax.f32 %v1718, 0.0
      %v1731 = vmax.f32 %v1719, 0.0
      %v1732 = vmax.f32 %v1720, 0.0
      %v1733 = vmax.f32 %v1721, 0.0
      %v1734 = vmax.f32 %v1722, 0.0
      %v1735 = vmax.f32 %v1723, 0.0
      %v1736 = vmax.f32 %v1724, 0.0
      %v1737 = vmax.f32 %v1725, 0.0
      %v1738 = vmax.f32 %v1726, 0.0
      %v1739 = vld [vmem:[%s1] sm:$0x7]
      %v1741 = vperm.slane %v1739, 0
      %v1742 = vperm.slane %v1739, 1
      %v1743 = vperm.slane %v1739, 2
      %v1747 = vmul.f32 %v1727, %v1741
      %v1748 = vmul.f32 %v1728, %v1742
      %v1749 = vmul.f32 %v1729, %v1743
      %v1750 = vmul.f32 %v1730, %v1741
      %v1751 = vmul.f32 %v1731, %v1742
      %v1752 = vmul.f32 %v1732, %v1743
      %v1753 = vmul.f32 %v1733, %v1741
      %v1754 = vmul.f32 %v1734, %v1742
      %v1755 = vmul.f32 %v1735, %v1743
      %v1756 = vmul.f32 %v1736, %v1741
      %v1757 = vmul.f32 %v1737, %v1742
      %v1758 = vmul.f32 %v1738, %v1743
      %v1759 = vpack.c.bf16 %v1748, %v1747
      %v1760 = vpack.c.bf16 %v1749, %v1749
      %v1761 = vpack.c.bf16 %v1751, %v1750
      %v1762 = vpack.c.bf16 %v1752, %v1752
      %v1763 = vpack.c.bf16 %v1754, %v1753
      %v1764 = vpack.c.bf16 %v1755, %v1755
      %v1765 = vpack.c.bf16 %v1757, %v1756
      %v1766 = vpack.c.bf16 %v1758, %v1758
      %1767 = vst [vmem:[#allocation2] sm:$0xff] %v1759
      %1768 = vst.msk [vmem:[#allocation2 + $0x8] sm:$0xf] %vm1529, %v1760
      %1769 = vst [vmem:[#allocation2 + $0xc] sm:$0xff] %v1761
      %1770 = vst.msk [vmem:[#allocation2 + $0x14] sm:$0xf] %vm1529, %v1762
      %1771 = vst [vmem:[#allocation2 + $0x18] sm:$0xff] %v1763
      %1772 = vst.msk [vmem:[#allocation2 + $0x20] sm:$0xf] %vm1529, %v1764
      %1773 = vst [vmem:[#allocation2 + $0x24] sm:$0xff] %v1765
      %1774 = vst.msk [vmem:[#allocation2 + $0x2c] sm:$0xf] %vm1529, %v1766
      %v1775 = vld [vmem:[#allocation2] sm:$0xff]
      %v1776 = vld [vmem:[#allocation2 + $0x8] sm:$0xf]
      %v1777 = vld [vmem:[#allocation2 + $0xc] sm:$0xff]
      %v1778 = vld [vmem:[#allocation2 + $0x14] sm:$0xf]
      %v1779 = vld [vmem:[#allocation2 + $0x18] sm:$0xff]
      %v1780 = vld [vmem:[#allocation2 + $0x20] sm:$0xf]
      %v1781 = vld [vmem:[#allocation2 + $0x24] sm:$0xff]
      %v1782 = vld [vmem:[#allocation2 + $0x2c] sm:$0xf]
      %1783 = vst [vmem:[#allocation3] sm:$0xff] %v1775
      %vm1784 = vcmask 551936
      %1785 = vst.msk [vmem:[#allocation3 + $0x8] sm:$0xf] %vm1784, %v1776
      %1786 = vst [vmem:[#allocation3 + $0xc] sm:$0xff] %v1777
      %1787 = vst.msk [vmem:[#allocation3 + $0x14] sm:$0xf] %vm1784, %v1778
      %1788 = vst [vmem:[#allocation3 + $0x18] sm:$0xff] %v1779
      %1789 = vst.msk [vmem:[#allocation3 + $0x20] sm:$0xf] %vm1784, %v1780
      %1790 = vst [vmem:[#allocation3 + $0x24] sm:$0xff] %v1781
      %1791 = vst.msk [vmem:[#allocation3 + $0x2c] sm:$0xf] %vm1784, %v1782
      %v1792 = vld [vmem:[#allocation2] sm:$0xff]
      %v1793 = vld [vmem:[#allocation2 + $0x8] sm:$0xf]
      %v1794 = vld [vmem:[#allocation2 + $0xc] sm:$0xff]
      %v1795 = vld [vmem:[#allocation2 + $0x14] sm:$0xf]
      %v1796 = vld [vmem:[#allocation2 + $0x18] sm:$0xff]
      %v1797 = vld [vmem:[#allocation2 + $0x20] sm:$0xf]
      %v1798 = vld [vmem:[#allocation2 + $0x24] sm:$0xff]
      %v1799 = vld [vmem:[#allocation2 + $0x2c] sm:$0xf]
      %1808 = vrot.lane.b32.xlu0 %v1792, 127
      %v1809 = vpop.permute.xlu0 %1808
      %1810 = vrot.lane.b32.xlu0 %v1793, 127
      %v1811 = vpop.permute.xlu0 %1810
      %1812 = vrot.lane.b32.xlu0 %v1794, 127
      %v1813 = vpop.permute.xlu0 %1812
      %1814 = vrot.lane.b32.xlu0 %v1795, 127
      %v1815 = vpop.permute.xlu0 %1814
      %1816 = vrot.lane.b32.xlu0 %v1796, 127
      %v1817 = vpop.permute.xlu0 %1816
      %1818 = vrot.lane.b32.xlu0 %v1797, 127
      %v1819 = vpop.permute.xlu0 %1818
      %1820 = vrot.lane.b32.xlu0 %v1798, 127
      %v1821 = vpop.permute.xlu0 %1820
      %1822 = vrot.lane.b32.xlu0 %v1799, 127
      %v1823 = vpop.permute.xlu0 %1822
      %v1824 = vrot.slane %v1809, 4
      %v1825 = vrot.slane %v1811, 4
      %v1826 = vrot.slane %v1813, 4
      %v1827 = vrot.slane %v1815, 4
      %v1828 = vrot.slane %v1817, 4
      %v1829 = vrot.slane %v1819, 4
      %v1830 = vrot.slane %v1821, 4
      %v1831 = vrot.slane %v1823, 4
      %vm1832 = vcmask 1043456
      %v1833 = vsel %vm1832, %v1824, %v1825
      %v1834 = vsel %vm422, %v1809, %v1833
      %v1835 = vsel %vm1832, %v1826, %v1827
      %v1836 = vsel %vm422, %v1813, %v1835
      %v1837 = vsel %vm1832, %v1828, %v1829
      %v1838 = vsel %vm422, %v1817, %v1837
      %v1839 = vsel %vm1832, %v1830, %v1831
      %v1840 = vsel %vm422, %v1821, %v1839
      %1849 = vst [vmem:[#allocation3 + $0x30] sm:$0xff] %v1834
      %1850 = vst.msk [vmem:[#allocation3 + $0x38] sm:$0xf] %vm1784, %v1811
      %1851 = vst [vmem:[#allocation3 + $0x3c] sm:$0xff] %v1836
      %1852 = vst.msk [vmem:[#allocation3 + $0x44] sm:$0xf] %vm1784, %v1815
      %1853 = vst [vmem:[#allocation3 + $0x48] sm:$0xff] %v1838
      %1854 = vst.msk [vmem:[#allocation3 + $0x50] sm:$0xf] %vm1784, %v1819
      %1855 = vst [vmem:[#allocation3 + $0x54] sm:$0xff] %v1840
      %1856 = vst.msk [vmem:[#allocation3 + $0x5c] sm:$0xf] %vm1784, %v1823
      %v1857 = vld [vmem:[#allocation2] sm:$0xff]
      %v1858 = vld [vmem:[#allocation2 + $0x8] sm:$0xf]
      %v1859 = vld [vmem:[#allocation2 + $0xc] sm:$0xff]
      %v1860 = vld [vmem:[#allocation2 + $0x14] sm:$0xf]
      %v1861 = vld [vmem:[#allocation2 + $0x18] sm:$0xff]
      %v1862 = vld [vmem:[#allocation2 + $0x20] sm:$0xf]
      %v1863 = vld [vmem:[#allocation2 + $0x24] sm:$0xff]
      %v1864 = vld [vmem:[#allocation2 + $0x2c] sm:$0xf]
      %1873 = vrot.lane.b32.xlu0 %v1857, 126
      %v1874 = vpop.permute.xlu0 %1873
      %1875 = vrot.lane.b32.xlu0 %v1858, 126
      %v1876 = vpop.permute.xlu0 %1875
      %1877 = vrot.lane.b32.xlu0 %v1859, 126
      %v1878 = vpop.permute.xlu0 %1877
      %1879 = vrot.lane.b32.xlu0 %v1860, 126
      %v1880 = vpop.permute.xlu0 %1879
      %1881 = vrot.lane.b32.xlu0 %v1861, 126
      %v1882 = vpop.permute.xlu0 %1881
      %1883 = vrot.lane.b32.xlu0 %v1862, 126
      %v1884 = vpop.permute.xlu0 %1883
      %1885 = vrot.lane.b32.xlu0 %v1863, 126
      %v1886 = vpop.permute.xlu0 %1885
      %1887 = vrot.lane.b32.xlu0 %v1864, 126
      %v1888 = vpop.permute.xlu0 %1887
      %v1889 = vrot.slane %v1874, 4
      %v1890 = vrot.slane %v1876, 4
      %v1891 = vrot.slane %v1878, 4
      %v1892 = vrot.slane %v1880, 4
      %v1893 = vrot.slane %v1882, 4
      %v1894 = vrot.slane %v1884, 4
      %v1895 = vrot.slane %v1886, 4
      %v1896 = vrot.slane %v1888, 4
      %v1897 = vsel %vm1832, %v1889, %v1890
      %v1898 = vsel %vm612, %v1874, %v1897
      %v1899 = vsel %vm1832, %v1891, %v1892
      %v1900 = vsel %vm612, %v1878, %v1899
      %v1901 = vsel %vm1832, %v1893, %v1894
      %v1902 = vsel %vm612, %v1882, %v1901
      %v1903 = vsel %vm1832, %v1895, %v1896
      %v1904 = vsel %vm612, %v1886, %v1903
      %1913 = vst [vmem:[#allocation3 + $0x60] sm:$0xff] %v1898
      %1914 = vst.msk [vmem:[#allocation3 + $0x68] sm:$0xf] %vm1784, %v1876
      %1915 = vst [vmem:[#allocation3 + $0x6c] sm:$0xff] %v1900
      %1916 = vst.msk [vmem:[#allocation3 + $0x74] sm:$0xf] %vm1784, %v1880
      %1917 = vst [vmem:[#allocation3 + $0x78] sm:$0xff] %v1902
      %1918 = vst.msk [vmem:[#allocation3 + $0x80] sm:$0xf] %vm1784, %v1884
      %1919 = vst [vmem:[#allocation3 + $0x84] sm:$0xff] %v1904
      %1920 = vst.msk [vmem:[#allocation3 + $0x8c] sm:$0xf] %vm1784, %v1888
      %v1921 = vld [vmem:[#allocation2] sm:$0xff]
      %v1922 = vld [vmem:[#allocation2 + $0x8] sm:$0xf]
      %v1923 = vld [vmem:[#allocation2 + $0xc] sm:$0xff]
      %v1924 = vld [vmem:[#allocation2 + $0x14] sm:$0xf]
      %v1925 = vld [vmem:[#allocation2 + $0x18] sm:$0xff]
      %v1926 = vld [vmem:[#allocation2 + $0x20] sm:$0xf]
      %v1927 = vld [vmem:[#allocation2 + $0x24] sm:$0xff]
      %v1928 = vld [vmem:[#allocation2 + $0x2c] sm:$0xf]
      %1937 = vrot.lane.b32.xlu0 %v1921, 110
      %v1938 = vpop.permute.xlu0 %1937
      %1939 = vrot.lane.b32.xlu0 %v1922, 110
      %v1940 = vpop.permute.xlu0 %1939
      %1941 = vrot.lane.b32.xlu0 %v1923, 110
      %v1942 = vpop.permute.xlu0 %1941
      %1943 = vrot.lane.b32.xlu0 %v1924, 110
      %v1944 = vpop.permute.xlu0 %1943
      %1945 = vrot.lane.b32.xlu0 %v1925, 110
      %v1946 = vpop.permute.xlu0 %1945
      %1947 = vrot.lane.b32.xlu0 %v1926, 110
      %v1948 = vpop.permute.xlu0 %1947
      %1949 = vrot.lane.b32.xlu0 %v1927, 110
      %v1950 = vpop.permute.xlu0 %1949
      %1951 = vrot.lane.b32.xlu0 %v1928, 110
      %v1952 = vpop.permute.xlu0 %1951
      %v1953 = vrot.slane %v1938, 4
      %v1954 = vrot.slane %v1940, 4
      %v1955 = vrot.slane %v1942, 4
      %v1956 = vrot.slane %v1944, 4
      %v1957 = vrot.slane %v1946, 4
      %v1958 = vrot.slane %v1948, 4
      %v1959 = vrot.slane %v1950, 4
      %v1960 = vrot.slane %v1952, 4
      %v1961 = vsel %vm1832, %v1953, %v1954
      %v1962 = vsel %vm729, %v1938, %v1961
      %v1963 = vsel %vm1832, %v1955, %v1956
      %v1964 = vsel %vm729, %v1942, %v1963
      %v1965 = vsel %vm1832, %v1957, %v1958
      %v1966 = vsel %vm729, %v1946, %v1965
      %v1967 = vsel %vm1832, %v1959, %v1960
      %v1968 = vsel %vm729, %v1950, %v1967
      %1977 = vst [vmem:[#allocation3 + $0x90] sm:$0xff] %v1962
      %1978 = vst.msk [vmem:[#allocation3 + $0x98] sm:$0xf] %vm1784, %v1940
      %1979 = vst [vmem:[#allocation3 + $0x9c] sm:$0xff] %v1964
      %1980 = vst.msk [vmem:[#allocation3 + $0xa4] sm:$0xf] %vm1784, %v1944
      %1981 = vst [vmem:[#allocation3 + $0xa8] sm:$0xff] %v1966
      %1982 = vst.msk [vmem:[#allocation3 + $0xb0] sm:$0xf] %vm1784, %v1948
      %1983 = vst [vmem:[#allocation3 + $0xb4] sm:$0xff] %v1968
      %1984 = vst.msk [vmem:[#allocation3 + $0xbc] sm:$0xf] %vm1784, %v1952
      %v1985 = vld [vmem:[#allocation2] sm:$0xff]
      %v1986 = vld [vmem:[#allocation2 + $0x8] sm:$0xf]
      %v1987 = vld [vmem:[#allocation2 + $0xc] sm:$0xff]
      %v1988 = vld [vmem:[#allocation2 + $0x14] sm:$0xf]
      %v1989 = vld [vmem:[#allocation2 + $0x18] sm:$0xff]
      %v1990 = vld [vmem:[#allocation2 + $0x20] sm:$0xf]
      %v1991 = vld [vmem:[#allocation2 + $0x24] sm:$0xff]
      %v1992 = vld [vmem:[#allocation2 + $0x2c] sm:$0xf]
      %2001 = vrot.lane.b32.xlu0 %v1985, 109
      %v2002 = vpop.permute.xlu0 %2001
      %2003 = vrot.lane.b32.xlu0 %v1986, 109
      %v2004 = vpop.permute.xlu0 %2003
      %2005 = vrot.lane.b32.xlu0 %v1987, 109
      %v2006 = vpop.permute.xlu0 %2005
      %2007 = vrot.lane.b32.xlu0 %v1988, 109
      %v2008 = vpop.permute.xlu0 %2007
      %2009 = vrot.lane.b32.xlu0 %v1989, 109
      %v2010 = vpop.permute.xlu0 %2009
      %2011 = vrot.lane.b32.xlu0 %v1990, 109
      %v2012 = vpop.permute.xlu0 %2011
      %2013 = vrot.lane.b32.xlu0 %v1991, 109
      %v2014 = vpop.permute.xlu0 %2013
      %2015 = vrot.lane.b32.xlu0 %v1992, 109
      %v2016 = vpop.permute.xlu0 %2015
      %v2017 = vrot.slane %v2002, 4
      %v2018 = vrot.slane %v2004, 4
      %v2019 = vrot.slane %v2006, 4
      %v2020 = vrot.slane %v2008, 4
      %v2021 = vrot.slane %v2010, 4
      %v2022 = vrot.slane %v2012, 4
      %v2023 = vrot.slane %v2014, 4
      %v2024 = vrot.slane %v2016, 4
      %v2025 = vsel %vm1832, %v2017, %v2018
      %v2026 = vsel %vm846, %v2002, %v2025
      %v2027 = vsel %vm1832, %v2019, %v2020
      %v2028 = vsel %vm846, %v2006, %v2027
      %v2029 = vsel %vm1832, %v2021, %v2022
      %v2030 = vsel %vm846, %v2010, %v2029
      %v2031 = vsel %vm1832, %v2023, %v2024
      %v2032 = vsel %vm846, %v2014, %v2031
      %2041 = vst [vmem:[#allocation3 + $0xc0] sm:$0xff] %v2026
      %2042 = vst.msk [vmem:[#allocation3 + $0xc8] sm:$0xf] %vm1784, %v2004
      %2043 = vst [vmem:[#allocation3 + $0xcc] sm:$0xff] %v2028
      %2044 = vst.msk [vmem:[#allocation3 + $0xd4] sm:$0xf] %vm1784, %v2008
      %2045 = vst [vmem:[#allocation3 + $0xd8] sm:$0xff] %v2030
      %2046 = vst.msk [vmem:[#allocation3 + $0xe0] sm:$0xf] %vm1784, %v2012
      %2047 = vst [vmem:[#allocation3 + $0xe4] sm:$0xff] %v2032
      %2048 = vst.msk [vmem:[#allocation3 + $0xec] sm:$0xf] %vm1784, %v2016
      %v2049 = vld [vmem:[#allocation2] sm:$0xff]
      %v2050 = vld [vmem:[#allocation2 + $0x8] sm:$0xf]
      %v2051 = vld [vmem:[#allocation2 + $0xc] sm:$0xff]
      %v2052 = vld [vmem:[#allocation2 + $0x14] sm:$0xf]
      %v2053 = vld [vmem:[#allocation2 + $0x18] sm:$0xff]
      %v2054 = vld [vmem:[#allocation2 + $0x20] sm:$0xf]
      %v2055 = vld [vmem:[#allocation2 + $0x24] sm:$0xff]
      %v2056 = vld [vmem:[#allocation2 + $0x2c] sm:$0xf]
      %2065 = vrot.lane.b32.xlu0 %v2049, 108
      %v2066 = vpop.permute.xlu0 %2065
      %2067 = vrot.lane.b32.xlu0 %v2050, 108
      %v2068 = vpop.permute.xlu0 %2067
      %2069 = vrot.lane.b32.xlu0 %v2051, 108
      %v2070 = vpop.permute.xlu0 %2069
      %2071 = vrot.lane.b32.xlu0 %v2052, 108
      %v2072 = vpop.permute.xlu0 %2071
      %2073 = vrot.lane.b32.xlu0 %v2053, 108
      %v2074 = vpop.permute.xlu0 %2073
      %2075 = vrot.lane.b32.xlu0 %v2054, 108
      %v2076 = vpop.permute.xlu0 %2075
      %2077 = vrot.lane.b32.xlu0 %v2055, 108
      %v2078 = vpop.permute.xlu0 %2077
      %2079 = vrot.lane.b32.xlu0 %v2056, 108
      %v2080 = vpop.permute.xlu0 %2079
      %v2081 = vrot.slane %v2066, 4
      %v2082 = vrot.slane %v2068, 4
      %v2083 = vrot.slane %v2070, 4
      %v2084 = vrot.slane %v2072, 4
      %v2085 = vrot.slane %v2074, 4
      %v2086 = vrot.slane %v2076, 4
      %v2087 = vrot.slane %v2078, 4
      %v2088 = vrot.slane %v2080, 4
      %v2089 = vsel %vm1832, %v2081, %v2082
      %v2090 = vsel %vm963, %v2066, %v2089
      %v2091 = vsel %vm1832, %v2083, %v2084
      %v2092 = vsel %vm963, %v2070, %v2091
      %v2093 = vsel %vm1832, %v2085, %v2086
      %v2094 = vsel %vm963, %v2074, %v2093
      %v2095 = vsel %vm1832, %v2087, %v2088
      %v2096 = vsel %vm963, %v2078, %v2095
      %2105 = vst [vmem:[#allocation3 + $0xf0] sm:$0xff] %v2090
      %2106 = vst.msk [vmem:[#allocation3 + $0xf8] sm:$0xf] %vm1784, %v2068
      %2107 = vst [vmem:[#allocation3 + $0xfc] sm:$0xff] %v2092
      %2108 = vst.msk [vmem:[#allocation3 + $0x104] sm:$0xf] %vm1784, %v2072
      %2109 = vst [vmem:[#allocation3 + $0x108] sm:$0xff] %v2094
      %2110 = vst.msk [vmem:[#allocation3 + $0x110] sm:$0xf] %vm1784, %v2076
      %2111 = vst [vmem:[#allocation3 + $0x114] sm:$0xff] %v2096
      %2112 = vst.msk [vmem:[#allocation3 + $0x11c] sm:$0xf] %vm1784, %v2080
      %v2113 = vld [vmem:[#allocation2] sm:$0xff]
      %v2114 = vld [vmem:[#allocation2 + $0x8] sm:$0xf]
      %v2115 = vld [vmem:[#allocation2 + $0xc] sm:$0xff]
      %v2116 = vld [vmem:[#allocation2 + $0x14] sm:$0xf]
      %v2117 = vld [vmem:[#allocation2 + $0x18] sm:$0xff]
      %v2118 = vld [vmem:[#allocation2 + $0x20] sm:$0xf]
      %v2119 = vld [vmem:[#allocation2 + $0x24] sm:$0xff]
      %v2120 = vld [vmem:[#allocation2 + $0x2c] sm:$0xf]
      %2129 = vrot.lane.b32.xlu0 %v2113, 92
      %v2130 = vpop.permute.xlu0 %2129
      %2131 = vrot.lane.b32.xlu0 %v2114, 92
      %v2132 = vpop.permute.xlu0 %2131
      %2133 = vrot.lane.b32.xlu0 %v2115, 92
      %v2134 = vpop.permute.xlu0 %2133
      %2135 = vrot.lane.b32.xlu0 %v2116, 92
      %v2136 = vpop.permute.xlu0 %2135
      %2137 = vrot.lane.b32.xlu0 %v2117, 92
      %v2138 = vpop.permute.xlu0 %2137
      %2139 = vrot.lane.b32.xlu0 %v2118, 92
      %v2140 = vpop.permute.xlu0 %2139
      %2141 = vrot.lane.b32.xlu0 %v2119, 92
      %v2142 = vpop.permute.xlu0 %2141
      %2143 = vrot.lane.b32.xlu0 %v2120, 92
      %v2144 = vpop.permute.xlu0 %2143
      %v2145 = vrot.slane %v2130, 4
      %v2146 = vrot.slane %v2132, 4
      %v2147 = vrot.slane %v2134, 4
      %v2148 = vrot.slane %v2136, 4
      %v2149 = vrot.slane %v2138, 4
      %v2150 = vrot.slane %v2140, 4
      %v2151 = vrot.slane %v2142, 4
      %v2152 = vrot.slane %v2144, 4
      %v2153 = vsel %vm1832, %v2145, %v2146
      %v2154 = vsel %vm1084, %v2130, %v2153
      %v2155 = vsel %vm1832, %v2147, %v2148
      %v2156 = vsel %vm1084, %v2134, %v2155
      %v2157 = vsel %vm1832, %v2149, %v2150
      %v2158 = vsel %vm1084, %v2138, %v2157
      %v2159 = vsel %vm1832, %v2151, %v2152
      %v2160 = vsel %vm1084, %v2142, %v2159
      %2169 = vst [vmem:[#allocation3 + $0x120] sm:$0xff] %v2154
      %2170 = vst.msk [vmem:[#allocation3 + $0x128] sm:$0xf] %vm1784, %v2132
      %2171 = vst [vmem:[#allocation3 + $0x12c] sm:$0xff] %v2156
      %2172 = vst.msk [vmem:[#allocation3 + $0x134] sm:$0xf] %vm1784, %v2136
      %2173 = vst [vmem:[#allocation3 + $0x138] sm:$0xff] %v2158
      %2174 = vst.msk [vmem:[#allocation3 + $0x140] sm:$0xf] %vm1784, %v2140
      %2175 = vst [vmem:[#allocation3 + $0x144] sm:$0xff] %v2160
      %2176 = vst.msk [vmem:[#allocation3 + $0x14c] sm:$0xf] %vm1784, %v2144
      %v2177 = vld [vmem:[#allocation2] sm:$0xff]
      %v2178 = vld [vmem:[#allocation2 + $0x8] sm:$0xf]
      %v2179 = vld [vmem:[#allocation2 + $0xc] sm:$0xff]
      %v2180 = vld [vmem:[#allocation2 + $0x14] sm:$0xf]
      %v2181 = vld [vmem:[#allocation2 + $0x18] sm:$0xff]
      %v2182 = vld [vmem:[#allocation2 + $0x20] sm:$0xf]
      %v2183 = vld [vmem:[#allocation2 + $0x24] sm:$0xff]
      %v2184 = vld [vmem:[#allocation2 + $0x2c] sm:$0xf]
      %2193 = vrot.lane.b32.xlu0 %v2177, 91
      %v2194 = vpop.permute.xlu0 %2193
      %2195 = vrot.lane.b32.xlu0 %v2178, 91
      %v2196 = vpop.permute.xlu0 %2195
      %2197 = vrot.lane.b32.xlu0 %v2179, 91
      %v2198 = vpop.permute.xlu0 %2197
      %2199 = vrot.lane.b32.xlu0 %v2180, 91
      %v2200 = vpop.permute.xlu0 %2199
      %2201 = vrot.lane.b32.xlu0 %v2181, 91
      %v2202 = vpop.permute.xlu0 %2201
      %2203 = vrot.lane.b32.xlu0 %v2182, 91
      %v2204 = vpop.permute.xlu0 %2203
      %2205 = vrot.lane.b32.xlu0 %v2183, 91
      %v2206 = vpop.permute.xlu0 %2205
      %2207 = vrot.lane.b32.xlu0 %v2184, 91
      %v2208 = vpop.permute.xlu0 %2207
      %v2209 = vrot.slane %v2194, 4
      %v2210 = vrot.slane %v2196, 4
      %v2211 = vrot.slane %v2198, 4
      %v2212 = vrot.slane %v2200, 4
      %v2213 = vrot.slane %v2202, 4
      %v2214 = vrot.slane %v2204, 4
      %v2215 = vrot.slane %v2206, 4
      %v2216 = vrot.slane %v2208, 4
      %v2217 = vsel %vm1832, %v2209, %v2210
      %v2218 = vsel %vm1206, %v2194, %v2217
      %v2219 = vsel %vm1832, %v2211, %v2212
      %v2220 = vsel %vm1206, %v2198, %v2219
      %v2221 = vsel %vm1832, %v2213, %v2214
      %v2222 = vsel %vm1206, %v2202, %v2221
      %v2223 = vsel %vm1832, %v2215, %v2216
      %v2224 = vsel %vm1206, %v2206, %v2223
      %2233 = vst [vmem:[#allocation3 + $0x150] sm:$0xff] %v2218
      %2234 = vst.msk [vmem:[#allocation3 + $0x158] sm:$0xf] %vm1784, %v2196
      %2235 = vst [vmem:[#allocation3 + $0x15c] sm:$0xff] %v2220
      %2236 = vst.msk [vmem:[#allocation3 + $0x164] sm:$0xf] %vm1784, %v2200
      %2237 = vst [vmem:[#allocation3 + $0x168] sm:$0xff] %v2222
      %2238 = vst.msk [vmem:[#allocation3 + $0x170] sm:$0xf] %vm1784, %v2204
      %2239 = vst [vmem:[#allocation3 + $0x174] sm:$0xff] %v2224
      %2240 = vst.msk [vmem:[#allocation3 + $0x17c] sm:$0xf] %vm1784, %v2208
      %v2241 = vld [vmem:[#allocation2] sm:$0xff]
      %v2242 = vld [vmem:[#allocation2 + $0x8] sm:$0xf]
      %v2243 = vld [vmem:[#allocation2 + $0xc] sm:$0xff]
      %v2244 = vld [vmem:[#allocation2 + $0x14] sm:$0xf]
      %v2245 = vld [vmem:[#allocation2 + $0x18] sm:$0xff]
      %v2246 = vld [vmem:[#allocation2 + $0x20] sm:$0xf]
      %v2247 = vld [vmem:[#allocation2 + $0x24] sm:$0xff]
      %v2248 = vld [vmem:[#allocation2 + $0x2c] sm:$0xf]
      %2257 = vrot.lane.b32.xlu0 %v2241, 90
      %v2258 = vpop.permute.xlu0 %2257
      %2259 = vrot.lane.b32.xlu0 %v2242, 90
      %v2260 = vpop.permute.xlu0 %2259
      %2261 = vrot.lane.b32.xlu0 %v2243, 90
      %v2262 = vpop.permute.xlu0 %2261
      %2263 = vrot.lane.b32.xlu0 %v2244, 90
      %v2264 = vpop.permute.xlu0 %2263
      %2265 = vrot.lane.b32.xlu0 %v2245, 90
      %v2266 = vpop.permute.xlu0 %2265
      %2267 = vrot.lane.b32.xlu0 %v2246, 90
      %v2268 = vpop.permute.xlu0 %2267
      %2269 = vrot.lane.b32.xlu0 %v2247, 90
      %v2270 = vpop.permute.xlu0 %2269
      %2271 = vrot.lane.b32.xlu0 %v2248, 90
      %v2272 = vpop.permute.xlu0 %2271
      %v2273 = vrot.slane %v2258, 4
      %v2274 = vrot.slane %v2260, 4
      %v2275 = vrot.slane %v2262, 4
      %v2276 = vrot.slane %v2264, 4
      %v2277 = vrot.slane %v2266, 4
      %v2278 = vrot.slane %v2268, 4
      %v2279 = vrot.slane %v2270, 4
      %v2280 = vrot.slane %v2272, 4
      %v2281 = vsel %vm1832, %v2273, %v2274
      %v2282 = vsel %vm1328, %v2258, %v2281
      %v2283 = vsel %vm1832, %v2275, %v2276
      %v2284 = vsel %vm1328, %v2262, %v2283
      %v2285 = vsel %vm1832, %v2277, %v2278
      %v2286 = vsel %vm1328, %v2266, %v2285
      %v2287 = vsel %vm1832, %v2279, %v2280
      %v2288 = vsel %vm1328, %v2270, %v2287
      %2297 = vst [vmem:[#allocation3 + $0x180] sm:$0xff] %v2282
      %2298 = vst.msk [vmem:[#allocation3 + $0x188] sm:$0xf] %vm1784, %v2260
      %2299 = vst [vmem:[#allocation3 + $0x18c] sm:$0xff] %v2284
      %2300 = vst.msk [vmem:[#allocation3 + $0x194] sm:$0xf] %vm1784, %v2264
      %2301 = vst [vmem:[#allocation3 + $0x198] sm:$0xff] %v2286
      %2302 = vst.msk [vmem:[#allocation3 + $0x1a0] sm:$0xf] %vm1784, %v2268
      %2303 = vst [vmem:[#allocation3 + $0x1a4] sm:$0xff] %v2288
      %2304 = vst.msk [vmem:[#allocation3 + $0x1ac] sm:$0xf] %vm1784, %v2272
      %v2305 = vld [vmem:[%s8] sm:$0xff]
      %v2306 = vld [vmem:[%s8 + $0x8] sm:$0xf]
      %v2307 = vld [vmem:[#allocation3] sm:$0xff]
      %v2308 = vld [vmem:[#allocation3 + $0x8] sm:$0xf]
      %v2309 = vld [vmem:[#allocation3 + $0xc] sm:$0xff]
      %v2310 = vld [vmem:[#allocation3 + $0x14] sm:$0xf]
      %v2311 = vld [vmem:[#allocation3 + $0x18] sm:$0xff]
      %v2312 = vld [vmem:[#allocation3 + $0x20] sm:$0xf]
      %v2313 = vld [vmem:[#allocation3 + $0x24] sm:$0xff]
      %v2314 = vld [vmem:[#allocation3 + $0x2c] sm:$0xf]
      %v2315 = vld [vmem:[#allocation3 + $0x30] sm:$0xff]
      %v2316 = vld [vmem:[#allocation3 + $0x38] sm:$0xf]
      %v2317 = vld [vmem:[#allocation3 + $0x3c] sm:$0xff]
      %v2318 = vld [vmem:[#allocation3 + $0x44] sm:$0xf]
      %v2319 = vld [vmem:[#allocation3 + $0x48] sm:$0xff]
      %v2320 = vld [vmem:[#allocation3 + $0x50] sm:$0xf]
      %v2321 = vld [vmem:[#allocation3 + $0x54] sm:$0xff]
      %v2322 = vld [vmem:[#allocation3 + $0x5c] sm:$0xf]
      %v2323 = vld [vmem:[#allocation3 + $0x60] sm:$0xff]
      %v2324 = vld [vmem:[#allocation3 + $0x68] sm:$0xf]
      %v2325 = vld [vmem:[#allocation3 + $0x6c] sm:$0xff]
      %v2326 = vld [vmem:[#allocation3 + $0x74] sm:$0xf]
      %v2327 = vld [vmem:[#allocation3 + $0x78] sm:$0xff]
      %v2328 = vld [vmem:[#allocation3 + $0x80] sm:$0xf]
      %v2329 = vld [vmem:[#allocation3 + $0x84] sm:$0xff]
      %v2330 = vld [vmem:[#allocation3 + $0x8c] sm:$0xf]
      %v2331 = vld [vmem:[#allocation3 + $0x90] sm:$0xff]
      %v2332 = vld [vmem:[#allocation3 + $0x98] sm:$0xf]
      %v2333 = vld [vmem:[#allocation3 + $0x9c] sm:$0xff]
      %v2334 = vld [vmem:[#allocation3 + $0xa4] sm:$0xf]
      %v2335 = vld [vmem:[#allocation3 + $0xa8] sm:$0xff]
      %v2336 = vld [vmem:[#allocation3 + $0xb0] sm:$0xf]
      %v2337 = vld [vmem:[#allocation3 + $0xb4] sm:$0xff]
      %v2338 = vld [vmem:[#allocation3 + $0xbc] sm:$0xf]
      %v2339 = vld [vmem:[#allocation3 + $0xc0] sm:$0xff]
      %v2340 = vld [vmem:[#allocation3 + $0xc8] sm:$0xf]
      %v2341 = vld [vmem:[#allocation3 + $0xcc] sm:$0xff]
      %v2342 = vld [vmem:[#allocation3 + $0xd4] sm:$0xf]
      %v2343 = vld [vmem:[#allocation3 + $0xd8] sm:$0xff]
      %v2344 = vld [vmem:[#allocation3 + $0xe0] sm:$0xf]
      %v2345 = vld [vmem:[#allocation3 + $0xe4] sm:$0xff]
      %v2346 = vld [vmem:[#allocation3 + $0xec] sm:$0xf]
      %v2347 = vld [vmem:[#allocation3 + $0xf0] sm:$0xff]
      %v2348 = vld [vmem:[#allocation3 + $0xf8] sm:$0xf]
      %v2349 = vld [vmem:[#allocation3 + $0xfc] sm:$0xff]
      %v2350 = vld [vmem:[#allocation3 + $0x104] sm:$0xf]
      %v2351 = vld [vmem:[#allocation3 + $0x108] sm:$0xff]
      %v2352 = vld [vmem:[#allocation3 + $0x110] sm:$0xf]
      %v2353 = vld [vmem:[#allocation3 + $0x114] sm:$0xff]
      %v2354 = vld [vmem:[#allocation3 + $0x11c] sm:$0xf]
      %v2355 = vld [vmem:[#allocation3 + $0x120] sm:$0xff]
      %v2356 = vld [vmem:[#allocation3 + $0x128] sm:$0xf]
      %v2357 = vld [vmem:[#allocation3 + $0x12c] sm:$0xff]
      %v2358 = vld [vmem:[#allocation3 + $0x134] sm:$0xf]
      %v2359 = vld [vmem:[#allocation3 + $0x138] sm:$0xff]
      %v2360 = vld [vmem:[#allocation3 + $0x140] sm:$0xf]
      %v2361 = vld [vmem:[#allocation3 + $0x144] sm:$0xff]
      %v2362 = vld [vmem:[#allocation3 + $0x14c] sm:$0xf]
      %v2363 = vld [vmem:[#allocation3 + $0x150] sm:$0xff]
      %v2364 = vld [vmem:[#allocation3 + $0x158] sm:$0xf]
      %v2365 = vld [vmem:[#allocation3 + $0x15c] sm:$0xff]
      %v2366 = vld [vmem:[#allocation3 + $0x164] sm:$0xf]
      %v2367 = vld [vmem:[#allocation3 + $0x168] sm:$0xff]
      %v2368 = vld [vmem:[#allocation3 + $0x170] sm:$0xf]
      %v2369 = vld [vmem:[#allocation3 + $0x174] sm:$0xff]
      %v2370 = vld [vmem:[#allocation3 + $0x17c] sm:$0xf]
      %v2371 = vld [vmem:[#allocation3 + $0x180] sm:$0xff]
      %v2372 = vld [vmem:[#allocation3 + $0x188] sm:$0xf]
      %v2373 = vld [vmem:[#allocation3 + $0x18c] sm:$0xff]
      %v2374 = vld [vmem:[#allocation3 + $0x194] sm:$0xf]
      %v2375 = vld [vmem:[#allocation3 + $0x198] sm:$0xff]
      %v2376 = vld [vmem:[#allocation3 + $0x1a0] sm:$0xf]
      %v2377 = vld [vmem:[#allocation3 + $0x1a4] sm:$0xff]
      %v2378 = vld [vmem:[#allocation3 + $0x1ac] sm:$0xf]
      %v2381 = vunpack.c.l.b16 %v2305
      %v2382 = vunpack.c.h.b16 %v2305
      %v2383 = vunpack.c.l.b16 %v2306
      %v2384 = vpack.c.b16 %v2381, %v2381
      %v2385 = vpack.c.b16 %v2382, %v2382
      %v2386 = vpack.c.b16 %v2383, %v2383
      %v2461 = vunpack.c.l.b16 %v2307
      %v2462 = vunpack.c.h.b16 %v2307
      %v2463 = vunpack.c.l.b16 %v2308
      %v2464 = vunpack.c.l.b16 %v2309
      %v2465 = vunpack.c.h.b16 %v2309
      %v2466 = vunpack.c.l.b16 %v2310
      %v2467 = vunpack.c.l.b16 %v2311
      %v2468 = vunpack.c.h.b16 %v2311
      %v2469 = vunpack.c.l.b16 %v2312
      %v2470 = vunpack.c.l.b16 %v2313
      %v2471 = vunpack.c.h.b16 %v2313
      %v2472 = vunpack.c.l.b16 %v2314
      %v2473 = vunpack.c.l.b16 %v2315
      %v2474 = vunpack.c.h.b16 %v2315
      %v2475 = vunpack.c.l.b16 %v2316
      %v2476 = vunpack.c.l.b16 %v2317
      %v2477 = vunpack.c.h.b16 %v2317
      %v2478 = vunpack.c.l.b16 %v2318
      %v2479 = vunpack.c.l.b16 %v2319
      %v2480 = vunpack.c.h.b16 %v2319
      %v2481 = vunpack.c.l.b16 %v2320
      %v2482 = vunpack.c.l.b16 %v2321
      %v2483 = vunpack.c.h.b16 %v2321
      %v2484 = vunpack.c.l.b16 %v2322
      %v2485 = vunpack.c.l.b16 %v2323
      %v2486 = vunpack.c.h.b16 %v2323
      %v2487 = vunpack.c.l.b16 %v2324
      %v2488 = vunpack.c.l.b16 %v2325
      %v2489 = vunpack.c.h.b16 %v2325
      %v2490 = vunpack.c.l.b16 %v2326
      %v2491 = vunpack.c.l.b16 %v2327
      %v2492 = vunpack.c.h.b16 %v2327
      %v2493 = vunpack.c.l.b16 %v2328
      %v2494 = vunpack.c.l.b16 %v2329
      %v2495 = vunpack.c.h.b16 %v2329
      %v2496 = vunpack.c.l.b16 %v2330
      %v2497 = vunpack.c.l.b16 %v2331
      %v2498 = vunpack.c.h.b16 %v2331
      %v2499 = vunpack.c.l.b16 %v2332
      %v2500 = vunpack.c.l.b16 %v2333
      %v2501 = vunpack.c.h.b16 %v2333
      %v2502 = vunpack.c.l.b16 %v2334
      %v2503 = vunpack.c.l.b16 %v2335
      %v2504 = vunpack.c.h.b16 %v2335
      %v2505 = vunpack.c.l.b16 %v2336
      %v2506 = vunpack.c.l.b16 %v2337
      %v2507 = vunpack.c.h.b16 %v2337
      %v2508 = vunpack.c.l.b16 %v2338
      %v2509 = vunpack.c.l.b16 %v2339
      %v2510 = vunpack.c.h.b16 %v2339
      %v2511 = vunpack.c.l.b16 %v2340
      %v2512 = vunpack.c.l.b16 %v2341
      %v2513 = vunpack.c.h.b16 %v2341
      %v2514 = vunpack.c.l.b16 %v2342
      %v2515 = vunpack.c.l.b16 %v2343
      %v2516 = vunpack.c.h.b16 %v2343
      %v2517 = vunpack.c.l.b16 %v2344
      %v2518 = vunpack.c.l.b16 %v2345
      %v2519 = vunpack.c.h.b16 %v2345
      %v2520 = vunpack.c.l.b16 %v2346
      %v2521 = vunpack.c.l.b16 %v2347
      %v2522 = vunpack.c.h.b16 %v2347
      %v2523 = vunpack.c.l.b16 %v2348
      %v2524 = vunpack.c.l.b16 %v2349
      %v2525 = vunpack.c.h.b16 %v2349
      %v2526 = vunpack.c.l.b16 %v2350
      %v2527 = vunpack.c.l.b16 %v2351
      %v2528 = vunpack.c.h.b16 %v2351
      %v2529 = vunpack.c.l.b16 %v2352
      %v2530 = vunpack.c.l.b16 %v2353
      %v2531 = vunpack.c.h.b16 %v2353
      %v2532 = vunpack.c.l.b16 %v2354
      %v2533 = vunpack.c.l.b16 %v2355
      %v2534 = vunpack.c.h.b16 %v2355
      %v2535 = vunpack.c.l.b16 %v2356
      %v2536 = vunpack.c.l.b16 %v2357
      %v2537 = vunpack.c.h.b16 %v2357
      %v2538 = vunpack.c.l.b16 %v2358
      %v2539 = vunpack.c.l.b16 %v2359
      %v2540 = vunpack.c.h.b16 %v2359
      %v2541 = vunpack.c.l.b16 %v2360
      %v2542 = vunpack.c.l.b16 %v2361
      %v2543 = vunpack.c.h.b16 %v2361
      %v2544 = vunpack.c.l.b16 %v2362
      %v2545 = vunpack.c.l.b16 %v2363
      %v2546 = vunpack.c.h.b16 %v2363
      %v2547 = vunpack.c.l.b16 %v2364
      %v2548 = vunpack.c.l.b16 %v2365
      %v2549 = vunpack.c.h.b16 %v2365
      %v2550 = vunpack.c.l.b16 %v2366
      %v2551 = vunpack.c.l.b16 %v2367
      %v2552 = vunpack.c.h.b16 %v2367
      %v2553 = vunpack.c.l.b16 %v2368
      %v2554 = vunpack.c.l.b16 %v2369
      %v2555 = vunpack.c.h.b16 %v2369
      %v2556 = vunpack.c.l.b16 %v2370
      %v2557 = vunpack.c.l.b16 %v2371
      %v2558 = vunpack.c.h.b16 %v2371
      %v2559 = vunpack.c.l.b16 %v2372
      %v2560 = vunpack.c.l.b16 %v2373
      %v2561 = vunpack.c.h.b16 %v2373
      %v2562 = vunpack.c.l.b16 %v2374
      %v2563 = vunpack.c.l.b16 %v2375
      %v2564 = vunpack.c.h.b16 %v2375
      %v2565 = vunpack.c.l.b16 %v2376
      %v2566 = vunpack.c.l.b16 %v2377
      %v2567 = vunpack.c.h.b16 %v2377
      %v2568 = vunpack.c.l.b16 %v2378
      %v2569 = vpack.c.b16 %v2464, %v2461
      %v2570 = vpack.c.b16 %v2465, %v2462
      %v2571 = vpack.c.b16 %v2466, %v2463
      %v2572 = vpack.c.b16 %v2470, %v2467
      %v2573 = vpack.c.b16 %v2471, %v2468
      %v2574 = vpack.c.b16 %v2472, %v2469
      %v2575 = vpack.c.b16 %v2476, %v2473
      %v2576 = vpack.c.b16 %v2477, %v2474
      %v2577 = vpack.c.b16 %v2478, %v2475
      %v2578 = vpack.c.b16 %v2482, %v2479
      %v2579 = vpack.c.b16 %v2483, %v2480
      %v2580 = vpack.c.b16 %v2484, %v2481
      %v2581 = vpack.c.b16 %v2488, %v2485
      %v2582 = vpack.c.b16 %v2489, %v2486
      %v2583 = vpack.c.b16 %v2490, %v2487
      %v2584 = vpack.c.b16 %v2494, %v2491
      %v2585 = vpack.c.b16 %v2495, %v2492
      %v2586 = vpack.c.b16 %v2496, %v2493
      %v2587 = vpack.c.b16 %v2500, %v2497
      %v2588 = vpack.c.b16 %v2501, %v2498
      %v2589 = vpack.c.b16 %v2502, %v2499
      %v2590 = vpack.c.b16 %v2506, %v2503
      %v2591 = vpack.c.b16 %v2507, %v2504
      %v2592 = vpack.c.b16 %v2508, %v2505
      %v2593 = vpack.c.b16 %v2512, %v2509
      %v2594 = vpack.c.b16 %v2513, %v2510
      %v2595 = vpack.c.b16 %v2514, %v2511
      %v2596 = vpack.c.b16 %v2518, %v2515
      %v2597 = vpack.c.b16 %v2519, %v2516
      %v2598 = vpack.c.b16 %v2520, %v2517
      %v2599 = vpack.c.b16 %v2524, %v2521
      %v2600 = vpack.c.b16 %v2525, %v2522
      %v2601 = vpack.c.b16 %v2526, %v2523
      %v2602 = vpack.c.b16 %v2530, %v2527
      %v2603 = vpack.c.b16 %v2531, %v2528
      %v2604 = vpack.c.b16 %v2532, %v2529
      %v2605 = vpack.c.b16 %v2536, %v2533
      %v2606 = vpack.c.b16 %v2537, %v2534
      %v2607 = vpack.c.b16 %v2538, %v2535
      %v2608 = vpack.c.b16 %v2542, %v2539
      %v2609 = vpack.c.b16 %v2543, %v2540
      %v2610 = vpack.c.b16 %v2544, %v2541
      %v2611 = vpack.c.b16 %v2548, %v2545
      %v2612 = vpack.c.b16 %v2549, %v2546
      %v2613 = vpack.c.b16 %v2550, %v2547
      %v2614 = vpack.c.b16 %v2554, %v2551
      %v2615 = vpack.c.b16 %v2555, %v2552
      %v2616 = vpack.c.b16 %v2556, %v2553
      %v2617 = vpack.c.b16 %v2560, %v2557
      %v2618 = vpack.c.b16 %v2561, %v2558
      %v2619 = vpack.c.b16 %v2562, %v2559
      %v2620 = vpack.c.b16 %v2566, %v2563
      %v2621 = vpack.c.b16 %v2567, %v2564
      %v2622 = vpack.c.b16 %v2568, %v2565
      %v2678 = vsel %vm1591, %v2386, 0
      %2680 = vmatpush.bf16.msra.mxu0 %v2590
      %2681 = vmatpush.bf16.msra.mxu0 %v2587
      %2682 = vmatpush.bf16.msra.mxu0 %v2584
      %2683 = vmatpush.bf16.msra.mxu0 %v2581
      %2684 = vmatpush.bf16.msra.mxu0 %v2578
      %2685 = vmatpush.bf16.msra.mxu0 %v2575
      %2686 = vmatpush.bf16.msra.mxu0 %v2572
      %2687 = vmatpush.bf16.msra.mxu0 %v2569
      %2688 = vmatmul.bf16.gmra.mxu0 %v2384
      %v2689 = vpop.f32.mrf.mxu0
      %v2690 = vadd.f32 0.0, %v2689
      %v2691 = vpop.f32.mrf.mxu0
      %2692 = vdwg.mxu0
      %2693 = vmatpush.bf16.msra.mxu0 %v2614
      %2694 = vmatpush.bf16.msra.mxu0 %v2611
      %2695 = vmatpush.bf16.msra.mxu0 %v2608
      %2696 = vmatpush.bf16.msra.mxu0 %v2605
      %2697 = vmatpush.bf16.msra.mxu0 %v2602
      %2698 = vmatpush.bf16.msra.mxu0 %v2599
      %2699 = vmatpush.bf16.msra.mxu0 %v2596
      %2700 = vmatpush.bf16.msra.mxu0 %v2593
      %2701 = vmatmul.bf16.gmra.mxu0 %v2385
      %v2702 = vpop.f32.mrf.mxu0
      %v2703 = vadd.f32 %v2690, %v2702
      %v2704 = vpop.f32.mrf.mxu0
      %2705 = vdwg.mxu0
      %2706 = vmatpush.bf16.msra.mxu0 0
      %2707 = vmatpush.bf16.msra.mxu0 0
      %2708 = vmatpush.bf16.msra.mxu0 0
      %2709 = vmatpush.bf16.msra.mxu0 0
      %2710 = vmatpush.bf16.msra.mxu0 0
      %2711 = vmatpush.bf16.msra.mxu0 0
      %2712 = vmatpush.bf16.msra.mxu0 %v2620
      %2713 = vmatpush.bf16.msra.mxu0 %v2617
      %2714 = vmatmul.bf16.gmra.mxu0 %v2678
      %v2715 = vpop.f32.mrf.mxu0
      %v2716 = vadd.f32 %v2703, %v2715
      %v2717 = vpop.f32.mrf.mxu0
      %2718 = vdwg.mxu0
      %2719 = vmatpush.bf16.msra.mxu0 %v2591
      %2720 = vmatpush.bf16.msra.mxu0 %v2588
      %2721 = vmatpush.bf16.msra.mxu0 %v2585
      %2722 = vmatpush.bf16.msra.mxu0 %v2582
      %2723 = vmatpush.bf16.msra.mxu0 %v2579
      %2724 = vmatpush.bf16.msra.mxu0 %v2576
      %2725 = vmatpush.bf16.msra.mxu0 %v2573
      %2726 = vmatpush.bf16.msra.mxu0 %v2570
      %2727 = vmatmul.bf16.gmra.mxu0 %v2384
      %v2728 = vpop.f32.mrf.mxu0
      %v2729 = vadd.f32 0.0, %v2728
      %v2730 = vpop.f32.mrf.mxu0
      %2731 = vdwg.mxu0
      %2732 = vmatpush.bf16.msra.mxu0 %v2615
      %2733 = vmatpush.bf16.msra.mxu0 %v2612
      %2734 = vmatpush.bf16.msra.mxu0 %v2609
      %2735 = vmatpush.bf16.msra.mxu0 %v2606
      %2736 = vmatpush.bf16.msra.mxu0 %v2603
      %2737 = vmatpush.bf16.msra.mxu0 %v2600
      %2738 = vmatpush.bf16.msra.mxu0 %v2597
      %2739 = vmatpush.bf16.msra.mxu0 %v2594
      %2740 = vmatmul.bf16.gmra.mxu0 %v2385
      %v2741 = vpop.f32.mrf.mxu0
      %v2742 = vadd.f32 %v2729, %v2741
      %v2743 = vpop.f32.mrf.mxu0
      %2744 = vdwg.mxu0
      %2745 = vmatpush.bf16.msra.mxu0 0
      %2746 = vmatpush.bf16.msra.mxu0 0
      %2747 = vmatpush.bf16.msra.mxu0 0
      %2748 = vmatpush.bf16.msra.mxu0 0
      %2749 = vmatpush.bf16.msra.mxu0 0
      %2750 = vmatpush.bf16.msra.mxu0 0
      %2751 = vmatpush.bf16.msra.mxu0 %v2621
      %2752 = vmatpush.bf16.msra.mxu0 %v2618
      %2753 = vmatmul.bf16.gmra.mxu0 %v2678
      %v2754 = vpop.f32.mrf.mxu0
      %v2755 = vadd.f32 %v2742, %v2754
      %v2756 = vpop.f32.mrf.mxu0
      %2757 = vdwg.mxu0
      %2758 = vmatpush.bf16.msra.mxu0 %v2592
      %2759 = vmatpush.bf16.msra.mxu0 %v2589
      %2760 = vmatpush.bf16.msra.mxu0 %v2586
      %2761 = vmatpush.bf16.msra.mxu0 %v2583
      %2762 = vmatpush.bf16.msra.mxu0 %v2580
      %2763 = vmatpush.bf16.msra.mxu0 %v2577
      %2764 = vmatpush.bf16.msra.mxu0 %v2574
      %2765 = vmatpush.bf16.msra.mxu0 %v2571
      %2766 = vmatmul.bf16.gmra.mxu0 %v2384
      %v2767 = vpop.f32.mrf.mxu0
      %v2768 = vadd.f32 0.0, %v2767
      %v2769 = vpop.f32.mrf.mxu0
      %2770 = vdwg.mxu0
      %2771 = vmatpush.bf16.msra.mxu0 %v2616
      %2772 = vmatpush.bf16.msra.mxu0 %v2613
      %2773 = vmatpush.bf16.msra.mxu0 %v2610
      %2774 = vmatpush.bf16.msra.mxu0 %v2607
      %2775 = vmatpush.bf16.msra.mxu0 %v2604
      %2776 = vmatpush.bf16.msra.mxu0 %v2601
      %2777 = vmatpush.bf16.msra.mxu0 %v2598
      %2778 = vmatpush.bf16.msra.mxu0 %v2595
      %2779 = vmatmul.bf16.gmra.mxu0 %v2385
      %v2780 = vpop.f32.mrf.mxu0
      %v2781 = vadd.f32 %v2768, %v2780
      %v2782 = vpop.f32.mrf.mxu0
      %2783 = vdwg.mxu0
      %2784 = vmatpush.bf16.msra.mxu0 0
      %2785 = vmatpush.bf16.msra.mxu0 0
      %2786 = vmatpush.bf16.msra.mxu0 0
      %2787 = vmatpush.bf16.msra.mxu0 0
      %2788 = vmatpush.bf16.msra.mxu0 0
      %2789 = vmatpush.bf16.msra.mxu0 0
      %2790 = vmatpush.bf16.msra.mxu0 %v2622
      %2791 = vmatpush.bf16.msra.mxu0 %v2619
      %2792 = vmatmul.bf16.gmra.mxu0 %v2678
      %v2793 = vpop.f32.mrf.mxu0
      %v2794 = vadd.f32 %v2781, %v2793
      %v2795 = vpop.f32.mrf.mxu0
      %2796 = vdwg.mxu0
      %v2797 = vld [vmem:[%s9] sm:$0xff]
      %2799 = vset.pattern.permute.xlu0 0
      %2800 = vperm.xlu0 %2799, %v2797
      %v2801 = vpop.permute.xlu0 %2800
      %v2803 = vmul.f32 %v2716, %v2801
      %v2804 = vmul.f32 %v2755, %v2801
      %v2805 = vmul.f32 %v2794, %v2801
      %v2806 = vld [vmem:[%s10] sm:$0xff]
      %2808 = vset.pattern.permute.xlu0 0
      %2809 = vperm.xlu0 %2808, %v2806
      %v2810 = vpop.permute.xlu0 %2809
      %v2812 = vadd.f32 %v2803, %v2810
      %v2813 = vadd.f32 %v2804, %v2810
      %v2814 = vadd.f32 %v2805, %v2810
      %2815 = vst [vmem:[%s386] sm:$0xff] %v2812
      %2816 = vst [vmem:[%s386 + $0x8] sm:$0xff] %v2813
      %vm2817 = vcmask 556032
      %2818 = vst.msk [vmem:[%s386 + $0x10] sm:$0xff] %vm2817, %v2814
      %p2819 = scmp.lt.s32.totalorder %s22, 1
      %s2820 = scalar_select %p2819, %s22, 1
      %s2821 = smul.addr %s2820, 3
      %s2822 = smul.addr %s2821, 8
      %s2823 = scalar_lea.vmem %s11, %s2822
      // Predicated region
      $region65: #{conv_block_forward.1} parent=63 // pred_check
        %p2824 = pneg %p276
      $region66: #{conv_block_forward.1} parent=63 // pred_check_branch
        %2826 = sbr.rel (%p2824) target = $region68
      $region67: #{conv_block_forward.1} parent=63 // pred_region
        _
      $region68: #{conv_block_forward.1} parent=63 // pred_fallthru
        _
    $region64: #{conv_block_forward.1} parent=5 // pred_fallthru
      _
    %p2827 = scmp.le.s32.totalorder 2, %s17
    // Predicated region
    $region69: #{conv_block_forward.1} parent=5 // pred_check
      %p2828 = pneg %p2827
    $region70: #{conv_block_forward.1} parent=5 // pred_check_branch
      %2830 = sbr.rel (%p2828) target = $region72
    $region71: #{conv_block_forward.1} parent=5 // pred_region
      %s2831 = ssub.s32 %s17, 2
      // Predicated region
      $region73: #{conv_block_forward.1} parent=71 // pred_check
        %p2832 = pneg %p282
      $region74: #{conv_block_forward.1} parent=71 // pred_check_branch
        %2834 = sbr.rel (%p2832) target = $region76
      $region75: #{conv_block_forward.1} parent=71 // pred_region
        %p2835 = scmp.lt.s32.totalorder %s23, 1
        %s2836 = scalar_select %p2835, %s23, 1
        %s2837 = smul.addr %s2836, 3
        %s2838 = smul.addr %s2837, 8
        %s2839 = scalar_lea.vmem %s11, %s2838
      $region76: #{conv_block_forward.1} parent=71 // pred_fallthru
        _
    $region72: #{conv_block_forward.1} parent=5 // pred_fallthru
      _
  $region6: #{conv_block_forward.1} parent=0 // loop_footer
    %s21 = sadd.s32 1, %s17
  $region7: #{conv_block_forward.1} parent=0 // loop_footer_branch
    %16 = sbr.rel target = $region3
  $region8: #{conv_block_forward.1} parent=0 // loop_exit
    _

</llo_original>
